<compile_context>
chip_gen: v5e
topology: v5e:2x2
jax: 0.10.0
libtpu: 0.0.40
codegen_flags: <defaults>
</compile_context>

<pallas_src>
import functools

import jax
import jax.numpy as jnp
import numpy as np
from jax.experimental import pallas as pl
from jax.experimental.pallas import tpu as pltpu


# ----------------------------------------------------------------------------
# fused KG kernel: full conv chain for one batch element, activations in vregs.
# ----------------------------------------------------------------------------
def _kg_fused_kernel(x_ref, w3_ref, b3_ref, w1_ref, b1_ref, mask_ref, o_ref,
                     *, alpha, n_layers, W, HW, pad):
    C = x_ref.shape[1]
    zpad = jnp.zeros((C, pad), jnp.bfloat16)

    # Hoisted boolean wrap-kill masks (already broadcast to (C, HW + 2*pad) in
    # the wrapper -> no broadcast_in_dim inside the hot loop).
    keep_m1 = mask_ref[0] > 0.5     # zero source columns x == W-1 (dx = -1 taps)
    keep_p1 = mask_ref[1] > 0.5     # zero source columns x == 0   (dx = +1 taps)

    act = x_ref[0].astype(jnp.bfloat16)                       # (C, HW)

    # Four 3x3 conv + bias + PReLU layers, fully vreg/VMEM resident.
    for l in range(n_layers):
        # Zero-padded flat activation; concat offsets are lane-tile aligned
        # (pad is a multiple of 128).
        padded = jnp.concatenate([zpad, act, zpad], axis=1)   # (C, HW + 2*pad)
        src_m1 = jnp.where(keep_m1, padded, jnp.zeros_like(padded))
        src_p1 = jnp.where(keep_p1, padded, jnp.zeros_like(padded))

        # Build the stacked-K operand: 9 shifted taps -> (9*C, HW) bf16.
        taps = []
        for dy in range(3):
            for dx in range(3):
                src = src_m1 if dx == 0 else (src_p1 if dx == 2 else padded)
                s = pad + (dy - 1) * W + (dx - 1)             # static offset
                taps.append(src[:, s:s + HW])
        stack = jnp.concatenate(taps, axis=0)                 # (9*C, HW) bf16

        # One K = 9*C matmul per layer (instead of 9 K=C matmuls).
        y = jnp.dot(w3_ref[l], stack,
                    preferred_element_type=jnp.float32) + b3_ref[l]
        y = jnp.where(y >= 0.0, y, alpha * y)                 # PReLU, f32
        act = y.astype(jnp.bfloat16)

    # 1x1 head conv: (Cout, C) x (C, HW) + bias, f32 accumulate + f32 output.
    out = jnp.dot(w1_ref[...], act,
                  preferred_element_type=jnp.float32) + b1_ref[...]
    o_ref[0] = out                                            # lane-dense store


# ----------------------------------------------------------------------------
# wrapper: packs parameters, builds wrap masks, launches one fused pallas_call.
# ----------------------------------------------------------------------------
def kg_pallas(x, layers, *, alpha):
    B, C, H, W = x.shape
    HW = H * W
    n_layers = len(layers) - 1                     # number of 3x3 layers
    pad = ((W + 1 + 127) // 128) * 128             # >= W+1 and lane-aligned
    assert pad >= W + 1
    HWP = HW + 2 * pad

    # 3x3 weights packed for the stacked matmul: (n_layers, Cout, 9*Cin) with
    # column index (ky*3 + kx)*Cin + ci, matching the in-kernel tap order.
    w3 = jnp.stack([jnp.transpose(w, (0, 2, 3, 1)).reshape(C, 9 * C)
                    for (w, _) in layers[:n_layers]]).astype(jnp.bfloat16)
    b3 = jnp.stack([b for (_, b) in layers[:n_layers]]
                   ).reshape(n_layers, C, 1).astype(jnp.float32)

    # 1x1 head.
    w5, b5 = layers[-1]
    cout = w5.shape[0]
    w1 = w5.reshape(cout, C).astype(jnp.bfloat16)
    b1 = b5.reshape(cout, 1).astype(jnp.float32)

    # Wrap-kill masks over the padded flat coordinate, pre-broadcast to C rows.
    # keep_m1: 0 where source x == W-1 (serves all three dx=-1 taps)
    # keep_p1: 0 where source x == 0   (serves all three dx=+1 taps)
    idx = jnp.arange(HWP, dtype=jnp.int32)
    xcol = (idx - pad) % W
    interior = (idx >= pad) & (idx < pad + HW)
    m_m1 = jnp.where(interior & (xcol == W - 1), 0.0, 1.0)
    m_p1 = jnp.where(interior & (xcol == 0), 0.0, 1.0)
    masks = jnp.broadcast_to(jnp.stack([m_m1, m_p1])[:, None, :],
                             (2, C, HWP)).astype(jnp.float32)

    x_flat = x.reshape(B, C, HW).astype(jnp.float32)

    flops = 2 * B * HW * C * (9 * C * n_layers + cout)
    bytes_accessed = int(x_flat.size * 4 + w3.size * 2 + b3.size * 4 +
                         w1.size * 2 + b1.size * 4 + masks.size * 4 +
                         B * cout * HW * 4)

    out = pl.pallas_call(
        functools.partial(_kg_fused_kernel, alpha=alpha, n_layers=n_layers,
                          W=W, HW=HW, pad=pad),
        out_shape=jax.ShapeDtypeStruct((B, cout, HW), jnp.float32),
        grid=(B,),
        in_specs=[
            pl.BlockSpec((1, C, HW), lambda i: (i, 0, 0)),
            pl.BlockSpec((n_layers, C, 9 * C), lambda i: (0, 0, 0)),
            pl.BlockSpec((n_layers, C, 1), lambda i: (0, 0, 0)),
            pl.BlockSpec((cout, C), lambda i: (0, 0)),
            pl.BlockSpec((cout, 1), lambda i: (0, 0)),
            pl.BlockSpec((2, C, HWP), lambda i: (0, 0, 0)),
        ],
        out_specs=pl.BlockSpec((1, cout, HW), lambda i: (i, 0, 0)),
        compiler_params=pltpu.CompilerParams(
            dimension_semantics=("parallel",),
            vmem_limit_bytes=32 * 1024 * 1024,
        ),
        cost_estimate=pl.CostEstimate(flops=flops, transcendentals=0,
                                      bytes_accessed=bytes_accessed),
    )(x_flat, w3, b3, w1, b1, masks)
    return out.reshape(B, cout, H, W)


# ----------------------------------------------------------------------------
# parameters (deterministic synthetic init; PReLU alpha = 0.25 = torch default)
# ----------------------------------------------------------------------------
def init_conv(key, cout, cin, k, scale=0.1):
    kw_, kb_ = jax.random.split(key)
    w = scale * jax.random.normal(kw_, (cout, cin, k, k), jnp.float32)
    b = scale * jax.random.normal(kb_, (cout,), jnp.float32)
    return w, b


def init_kg(key, n_feat, k, g):
    keys = jax.random.split(key, 5)
    layers = [init_conv(keys[i], n_feat, n_feat, 3) for i in range(4)]
    layers.append(init_conv(keys[4], k * k * g, n_feat, 1))   # 1x1 head
    return layers


# ----------------------------------------------------------------------------
# pure-JAX reference mirroring the torch module line-by-line.
# ----------------------------------------------------------------------------
def _prelu(x, alpha):
    return jnp.where(x >= 0, x, alpha * x)


def kg_ref(x, layers, alpha):
    for (w, b) in layers[:4]:
        y = jax.lax.conv_general_dilated(
            x, w, (1, 1), [(1, 1), (1, 1)],
            dimension_numbers=("NCHW", "OIHW", "NCHW"))
        x = _prelu(y + b.reshape(1, -1, 1, 1), alpha)
    w, b = layers[4]
    y = jax.lax.conv_general_dilated(
        x, w, (1, 1), [(0, 0), (0, 0)],
        dimension_numbers=("NCHW", "OIHW", "NCHW"))
    return y + b.reshape(1, -1, 1, 1)


if __name__ == "__main__":
    n_feat, kernel_size, group_num = 4, 3, 2
    B, H, W = 2, 16, 16

    key = jax.random.PRNGKey(0)
    k_x, k_p = jax.random.split(key)
    x = jax.random.normal(k_x, (B, n_feat, H, W), jnp.float32)
    layers = init_kg(k_p, n_feat, kernel_size, group_num)
    alpha = 0.25                                # nn.PReLU() default init

    out = kg_pallas(x, layers, alpha=alpha)
    out = jax.block_until_ready(out)

    # Accuracy is bf16-matmul-limited (weights/taps rounded to bf16), not f32.
    ref = kg_ref(x, layers, alpha)
    np.testing.assert_allclose(np.asarray(out), np.asarray(ref), rtol=2e-2, atol=2e-2)
    assert out.shape == (B, kernel_size * kernel_size * group_num, H, W)
    assert out.dtype == jnp.float32

    print("KERNEL_OK")
</pallas_src>

<mosaic_0001>
module attributes {stable_mosaic.version = 11 : i64} {
  func.func @_kg_fused_kernel(%arg0: i32, %arg1: memref<1x4x256xf32, #tpu.memory_space<vmem>>, %arg2: memref<4x4x36xbf16, #tpu.memory_space<vmem>>, %arg3: memref<4x4x1xf32, #tpu.memory_space<vmem>>, %arg4: memref<18x4xbf16, #tpu.memory_space<vmem>>, %arg5: memref<18x1xf32, #tpu.memory_space<vmem>>, %arg6: memref<2x4x512xf32, #tpu.memory_space<vmem>>, %arg7: memref<1x18x256xf32, #tpu.memory_space<vmem>>) attributes {dimension_semantics = [#tpu.dimension_semantics<parallel>], iteration_bounds = array<i64: 2>, scalar_prefetch = 0 : i64, scratch_operands = 0 : i64, tpu.core_type = #tpu.core_type<tc>, window_params = [{transform_indices = @transform_0, window_bounds = array<i64: 1, 4, 256>}, {pipeline_mode = #tpu.pipeline_mode<synchronous>, transform_indices = @transform_1, window_bounds = array<i64: 4, 4, 36>}, {pipeline_mode = #tpu.pipeline_mode<synchronous>, transform_indices = @transform_2, window_bounds = array<i64: 4, 4, 1>}, {pipeline_mode = #tpu.pipeline_mode<synchronous>, transform_indices = @transform_3, window_bounds = array<i64: 18, 4>}, {pipeline_mode = #tpu.pipeline_mode<synchronous>, transform_indices = @transform_4, window_bounds = array<i64: 18, 1>}, {pipeline_mode = #tpu.pipeline_mode<synchronous>, transform_indices = @transform_5, window_bounds = array<i64: 2, 4, 512>}, {transform_indices = @transform_6, window_bounds = array<i64: 1, 18, 256>}]} {
    %cst = arith.constant 0.000000e+00 : bf16
    %0 = vector.broadcast %cst : bf16 to vector<4x128xbf16>
    %c0 = arith.constant 0 : index
    %c0_0 = arith.constant 0 : index
    %c0_1 = arith.constant 0 : index
    %1 = vector.load %arg6[%c0, %c0_0, %c0_1] : memref<2x4x512xf32, #tpu.memory_space<vmem>>, vector<1x4x512xf32>
    %2 = vector.shape_cast %1 : vector<1x4x512xf32> to vector<4x512xf32>
    %cst_2 = arith.constant 5.000000e-01 : f32
    %3 = vector.broadcast %cst_2 : f32 to vector<4x512xf32>
    %4 = arith.cmpf ogt, %2, %3 : vector<4x512xf32>
    %c1 = arith.constant 1 : index
    %c0_3 = arith.constant 0 : index
    %c0_4 = arith.constant 0 : index
    %5 = vector.load %arg6[%c1, %c0_3, %c0_4] : memref<2x4x512xf32, #tpu.memory_space<vmem>>, vector<1x4x512xf32>
    %6 = vector.shape_cast %5 : vector<1x4x512xf32> to vector<4x512xf32>
    %cst_5 = arith.constant 5.000000e-01 : f32
    %7 = vector.broadcast %cst_5 : f32 to vector<4x512xf32>
    %8 = arith.cmpf ogt, %6, %7 : vector<4x512xf32>
    %c0_6 = arith.constant 0 : index
    %c0_7 = arith.constant 0 : index
    %c0_8 = arith.constant 0 : index
    %9 = vector.load %arg1[%c0_6, %c0_7, %c0_8] : memref<1x4x256xf32, #tpu.memory_space<vmem>>, vector<1x4x256xf32>
    %10 = vector.shape_cast %9 : vector<1x4x256xf32> to vector<4x256xf32>
    %11 = arith.truncf %10 : vector<4x256xf32> to vector<4x256xbf16>
    %12 = tpu.concatenate %0, %11, %0 in 1 : vector<4x128xbf16>, vector<4x256xbf16>, vector<4x128xbf16> -> vector<4x512xbf16>
    %cst_9 = arith.constant 0.000000e+00 : bf16
    %13 = vector.broadcast %cst_9 : bf16 to vector<4x512xbf16>
    %14 = arith.select %4, %12, %13 : vector<4x512xi1>, vector<4x512xbf16>
    %cst_10 = arith.constant 0.000000e+00 : bf16
    %15 = vector.broadcast %cst_10 : bf16 to vector<4x512xbf16>
    %16 = arith.select %8, %12, %15 : vector<4x512xi1>, vector<4x512xbf16>
    %17 = vector.extract_strided_slice %14 {offsets = [0, 111], sizes = [4, 256], strides = [1, 1]} : vector<4x512xbf16> to vector<4x256xbf16>
    %18 = vector.extract_strided_slice %12 {offsets = [0, 112], sizes = [4, 256], strides = [1, 1]} : vector<4x512xbf16> to vector<4x256xbf16>
    %19 = vector.extract_strided_slice %16 {offsets = [0, 113], sizes = [4, 256], strides = [1, 1]} : vector<4x512xbf16> to vector<4x256xbf16>
    %20 = vector.extract_strided_slice %14 {offsets = [0, 127], sizes = [4, 256], strides = [1, 1]} : vector<4x512xbf16> to vector<4x256xbf16>
    %21 = vector.extract_strided_slice %12 {offsets = [0, 128], sizes = [4, 256], strides = [1, 1]} : vector<4x512xbf16> to vector<4x256xbf16>
    %22 = vector.extract_strided_slice %16 {offsets = [0, 129], sizes = [4, 256], strides = [1, 1]} : vector<4x512xbf16> to vector<4x256xbf16>
    %23 = vector.extract_strided_slice %14 {offsets = [0, 143], sizes = [4, 256], strides = [1, 1]} : vector<4x512xbf16> to vector<4x256xbf16>
    %24 = vector.extract_strided_slice %12 {offsets = [0, 144], sizes = [4, 256], strides = [1, 1]} : vector<4x512xbf16> to vector<4x256xbf16>
    %25 = vector.extract_strided_slice %16 {offsets = [0, 145], sizes = [4, 256], strides = [1, 1]} : vector<4x512xbf16> to vector<4x256xbf16>
    %26 = tpu.concatenate %17, %18, %19, %20, %21, %22, %23, %24, %25 in 0 : vector<4x256xbf16>, vector<4x256xbf16>, vector<4x256xbf16>, vector<4x256xbf16>, vector<4x256xbf16>, vector<4x256xbf16>, vector<4x256xbf16>, vector<4x256xbf16>, vector<4x256xbf16> -> vector<36x256xbf16>
    %c0_11 = arith.constant 0 : index
    %c0_12 = arith.constant 0 : index
    %c0_13 = arith.constant 0 : index
    %27 = vector.load %arg2[%c0_11, %c0_12, %c0_13] : memref<4x4x36xbf16, #tpu.memory_space<vmem>>, vector<1x4x36xbf16>
    %28 = vector.shape_cast %27 : vector<1x4x36xbf16> to vector<4x36xbf16>
    %cst_14 = arith.constant dense<0.000000e+00> : vector<4x256xf32>
    %29 = tpu.matmul %28, %26, %cst_14 {dimension_numbers = #tpu.dot_dimension_numbers<[1], [0], [0], [1], [0, 0, 1, 1], [], []>} : vector<4x36xbf16>, vector<36x256xbf16>, vector<4x256xf32> -> vector<4x256xf32>
    %c0_15 = arith.constant 0 : index
    %c0_16 = arith.constant 0 : index
    %c0_17 = arith.constant 0 : index
    %30 = vector.load %arg3[%c0_15, %c0_16, %c0_17] : memref<4x4x1xf32, #tpu.memory_space<vmem>>, vector<1x4x1xf32>
    %31 = vector.shape_cast %30 : vector<1x4x1xf32> to vector<4x1xf32>
    %32 = vector.broadcast %31 : vector<4x1xf32> to vector<4x256xf32>
    %33 = arith.addf %29, %32 : vector<4x256xf32>
    %cst_18 = arith.constant 0.000000e+00 : f32
    %34 = vector.broadcast %cst_18 : f32 to vector<4x256xf32>
    %35 = arith.cmpf oge, %33, %34 : vector<4x256xf32>
    %cst_19 = arith.constant 2.500000e-01 : f32
    %36 = vector.broadcast %cst_19 : f32 to vector<4x256xf32>
    %37 = arith.mulf %36, %33 : vector<4x256xf32>
    %38 = arith.select %35, %33, %37 : vector<4x256xi1>, vector<4x256xf32>
    %39 = arith.truncf %38 : vector<4x256xf32> to vector<4x256xbf16>
    %40 = tpu.concatenate %0, %39, %0 in 1 : vector<4x128xbf16>, vector<4x256xbf16>, vector<4x128xbf16> -> vector<4x512xbf16>
    %cst_20 = arith.constant 0.000000e+00 : bf16
    %41 = vector.broadcast %cst_20 : bf16 to vector<4x512xbf16>
    %42 = arith.select %4, %40, %41 : vector<4x512xi1>, vector<4x512xbf16>
    %cst_21 = arith.constant 0.000000e+00 : bf16
    %43 = vector.broadcast %cst_21 : bf16 to vector<4x512xbf16>
    %44 = arith.select %8, %40, %43 : vector<4x512xi1>, vector<4x512xbf16>
    %45 = vector.extract_strided_slice %42 {offsets = [0, 111], sizes = [4, 256], strides = [1, 1]} : vector<4x512xbf16> to vector<4x256xbf16>
    %46 = vector.extract_strided_slice %40 {offsets = [0, 112], sizes = [4, 256], strides = [1, 1]} : vector<4x512xbf16> to vector<4x256xbf16>
    %47 = vector.extract_strided_slice %44 {offsets = [0, 113], sizes = [4, 256], strides = [1, 1]} : vector<4x512xbf16> to vector<4x256xbf16>
    %48 = vector.extract_strided_slice %42 {offsets = [0, 127], sizes = [4, 256], strides = [1, 1]} : vector<4x512xbf16> to vector<4x256xbf16>
    %49 = vector.extract_strided_slice %40 {offsets = [0, 128], sizes = [4, 256], strides = [1, 1]} : vector<4x512xbf16> to vector<4x256xbf16>
    %50 = vector.extract_strided_slice %44 {offsets = [0, 129], sizes = [4, 256], strides = [1, 1]} : vector<4x512xbf16> to vector<4x256xbf16>
    %51 = vector.extract_strided_slice %42 {offsets = [0, 143], sizes = [4, 256], strides = [1, 1]} : vector<4x512xbf16> to vector<4x256xbf16>
    %52 = vector.extract_strided_slice %40 {offsets = [0, 144], sizes = [4, 256], strides = [1, 1]} : vector<4x512xbf16> to vector<4x256xbf16>
    %53 = vector.extract_strided_slice %44 {offsets = [0, 145], sizes = [4, 256], strides = [1, 1]} : vector<4x512xbf16> to vector<4x256xbf16>
    %54 = tpu.concatenate %45, %46, %47, %48, %49, %50, %51, %52, %53 in 0 : vector<4x256xbf16>, vector<4x256xbf16>, vector<4x256xbf16>, vector<4x256xbf16>, vector<4x256xbf16>, vector<4x256xbf16>, vector<4x256xbf16>, vector<4x256xbf16>, vector<4x256xbf16> -> vector<36x256xbf16>
    %c1_22 = arith.constant 1 : index
    %c0_23 = arith.constant 0 : index
    %c0_24 = arith.constant 0 : index
    %55 = vector.load %arg2[%c1_22, %c0_23, %c0_24] : memref<4x4x36xbf16, #tpu.memory_space<vmem>>, vector<1x4x36xbf16>
    %56 = vector.shape_cast %55 : vector<1x4x36xbf16> to vector<4x36xbf16>
    %cst_25 = arith.constant dense<0.000000e+00> : vector<4x256xf32>
    %57 = tpu.matmul %56, %54, %cst_25 {dimension_numbers = #tpu.dot_dimension_numbers<[1], [0], [0], [1], [0, 0, 1, 1], [], []>} : vector<4x36xbf16>, vector<36x256xbf16>, vector<4x256xf32> -> vector<4x256xf32>
    %c1_26 = arith.constant 1 : index
    %c0_27 = arith.constant 0 : index
    %c0_28 = arith.constant 0 : index
    %58 = vector.load %arg3[%c1_26, %c0_27, %c0_28] : memref<4x4x1xf32, #tpu.memory_space<vmem>>, vector<1x4x1xf32>
    %59 = vector.shape_cast %58 : vector<1x4x1xf32> to vector<4x1xf32>
    %60 = vector.broadcast %59 : vector<4x1xf32> to vector<4x256xf32>
    %61 = arith.addf %57, %60 : vector<4x256xf32>
    %cst_29 = arith.constant 0.000000e+00 : f32
    %62 = vector.broadcast %cst_29 : f32 to vector<4x256xf32>
    %63 = arith.cmpf oge, %61, %62 : vector<4x256xf32>
    %cst_30 = arith.constant 2.500000e-01 : f32
    %64 = vector.broadcast %cst_30 : f32 to vector<4x256xf32>
    %65 = arith.mulf %64, %61 : vector<4x256xf32>
    %66 = arith.select %63, %61, %65 : vector<4x256xi1>, vector<4x256xf32>
    %67 = arith.truncf %66 : vector<4x256xf32> to vector<4x256xbf16>
    %68 = tpu.concatenate %0, %67, %0 in 1 : vector<4x128xbf16>, vector<4x256xbf16>, vector<4x128xbf16> -> vector<4x512xbf16>
    %cst_31 = arith.constant 0.000000e+00 : bf16
    %69 = vector.broadcast %cst_31 : bf16 to vector<4x512xbf16>
    %70 = arith.select %4, %68, %69 : vector<4x512xi1>, vector<4x512xbf16>
    %cst_32 = arith.constant 0.000000e+00 : bf16
    %71 = vector.broadcast %cst_32 : bf16 to vector<4x512xbf16>
    %72 = arith.select %8, %68, %71 : vector<4x512xi1>, vector<4x512xbf16>
    %73 = vector.extract_strided_slice %70 {offsets = [0, 111], sizes = [4, 256], strides = [1, 1]} : vector<4x512xbf16> to vector<4x256xbf16>
    %74 = vector.extract_strided_slice %68 {offsets = [0, 112], sizes = [4, 256], strides = [1, 1]} : vector<4x512xbf16> to vector<4x256xbf16>
    %75 = vector.extract_strided_slice %72 {offsets = [0, 113], sizes = [4, 256], strides = [1, 1]} : vector<4x512xbf16> to vector<4x256xbf16>
    %76 = vector.extract_strided_slice %70 {offsets = [0, 127], sizes = [4, 256], strides = [1, 1]} : vector<4x512xbf16> to vector<4x256xbf16>
    %77 = vector.extract_strided_slice %68 {offsets = [0, 128], sizes = [4, 256], strides = [1, 1]} : vector<4x512xbf16> to vector<4x256xbf16>
    %78 = vector.extract_strided_slice %72 {offsets = [0, 129], sizes = [4, 256], strides = [1, 1]} : vector<4x512xbf16> to vector<4x256xbf16>
    %79 = vector.extract_strided_slice %70 {offsets = [0, 143], sizes = [4, 256], strides = [1, 1]} : vector<4x512xbf16> to vector<4x256xbf16>
    %80 = vector.extract_strided_slice %68 {offsets = [0, 144], sizes = [4, 256], strides = [1, 1]} : vector<4x512xbf16> to vector<4x256xbf16>
    %81 = vector.extract_strided_slice %72 {offsets = [0, 145], sizes = [4, 256], strides = [1, 1]} : vector<4x512xbf16> to vector<4x256xbf16>
    %82 = tpu.concatenate %73, %74, %75, %76, %77, %78, %79, %80, %81 in 0 : vector<4x256xbf16>, vector<4x256xbf16>, vector<4x256xbf16>, vector<4x256xbf16>, vector<4x256xbf16>, vector<4x256xbf16>, vector<4x256xbf16>, vector<4x256xbf16>, vector<4x256xbf16> -> vector<36x256xbf16>
    %c2 = arith.constant 2 : index
    %c0_33 = arith.constant 0 : index
    %c0_34 = arith.constant 0 : index
    %83 = vector.load %arg2[%c2, %c0_33, %c0_34] : memref<4x4x36xbf16, #tpu.memory_space<vmem>>, vector<1x4x36xbf16>
    %84 = vector.shape_cast %83 : vector<1x4x36xbf16> to vector<4x36xbf16>
    %cst_35 = arith.constant dense<0.000000e+00> : vector<4x256xf32>
    %85 = tpu.matmul %84, %82, %cst_35 {dimension_numbers = #tpu.dot_dimension_numbers<[1], [0], [0], [1], [0, 0, 1, 1], [], []>} : vector<4x36xbf16>, vector<36x256xbf16>, vector<4x256xf32> -> vector<4x256xf32>
    %c2_36 = arith.constant 2 : index
    %c0_37 = arith.constant 0 : index
    %c0_38 = arith.constant 0 : index
    %86 = vector.load %arg3[%c2_36, %c0_37, %c0_38] : memref<4x4x1xf32, #tpu.memory_space<vmem>>, vector<1x4x1xf32>
    %87 = vector.shape_cast %86 : vector<1x4x1xf32> to vector<4x1xf32>
    %88 = vector.broadcast %87 : vector<4x1xf32> to vector<4x256xf32>
    %89 = arith.addf %85, %88 : vector<4x256xf32>
    %cst_39 = arith.constant 0.000000e+00 : f32
    %90 = vector.broadcast %cst_39 : f32 to vector<4x256xf32>
    %91 = arith.cmpf oge, %89, %90 : vector<4x256xf32>
    %cst_40 = arith.constant 2.500000e-01 : f32
    %92 = vector.broadcast %cst_40 : f32 to vector<4x256xf32>
    %93 = arith.mulf %92, %89 : vector<4x256xf32>
    %94 = arith.select %91, %89, %93 : vector<4x256xi1>, vector<4x256xf32>
    %95 = arith.truncf %94 : vector<4x256xf32> to vector<4x256xbf16>
    %96 = tpu.concatenate %0, %95, %0 in 1 : vector<4x128xbf16>, vector<4x256xbf16>, vector<4x128xbf16> -> vector<4x512xbf16>
    %cst_41 = arith.constant 0.000000e+00 : bf16
    %97 = vector.broadcast %cst_41 : bf16 to vector<4x512xbf16>
    %98 = arith.select %4, %96, %97 : vector<4x512xi1>, vector<4x512xbf16>
    %cst_42 = arith.constant 0.000000e+00 : bf16
    %99 = vector.broadcast %cst_42 : bf16 to vector<4x512xbf16>
    %100 = arith.select %8, %96, %99 : vector<4x512xi1>, vector<4x512xbf16>
    %101 = vector.extract_strided_slice %98 {offsets = [0, 111], sizes = [4, 256], strides = [1, 1]} : vector<4x512xbf16> to vector<4x256xbf16>
    %102 = vector.extract_strided_slice %96 {offsets = [0, 112], sizes = [4, 256], strides = [1, 1]} : vector<4x512xbf16> to vector<4x256xbf16>
    %103 = vector.extract_strided_slice %100 {offsets = [0, 113], sizes = [4, 256], strides = [1, 1]} : vector<4x512xbf16> to vector<4x256xbf16>
    %104 = vector.extract_strided_slice %98 {offsets = [0, 127], sizes = [4, 256], strides = [1, 1]} : vector<4x512xbf16> to vector<4x256xbf16>
    %105 = vector.extract_strided_slice %96 {offsets = [0, 128], sizes = [4, 256], strides = [1, 1]} : vector<4x512xbf16> to vector<4x256xbf16>
    %106 = vector.extract_strided_slice %100 {offsets = [0, 129], sizes = [4, 256], strides = [1, 1]} : vector<4x512xbf16> to vector<4x256xbf16>
    %107 = vector.extract_strided_slice %98 {offsets = [0, 143], sizes = [4, 256], strides = [1, 1]} : vector<4x512xbf16> to vector<4x256xbf16>
    %108 = vector.extract_strided_slice %96 {offsets = [0, 144], sizes = [4, 256], strides = [1, 1]} : vector<4x512xbf16> to vector<4x256xbf16>
    %109 = vector.extract_strided_slice %100 {offsets = [0, 145], sizes = [4, 256], strides = [1, 1]} : vector<4x512xbf16> to vector<4x256xbf16>
    %110 = tpu.concatenate %101, %102, %103, %104, %105, %106, %107, %108, %109 in 0 : vector<4x256xbf16>, vector<4x256xbf16>, vector<4x256xbf16>, vector<4x256xbf16>, vector<4x256xbf16>, vector<4x256xbf16>, vector<4x256xbf16>, vector<4x256xbf16>, vector<4x256xbf16> -> vector<36x256xbf16>
    %c3 = arith.constant 3 : index
    %c0_43 = arith.constant 0 : index
    %c0_44 = arith.constant 0 : index
    %111 = vector.load %arg2[%c3, %c0_43, %c0_44] : memref<4x4x36xbf16, #tpu.memory_space<vmem>>, vector<1x4x36xbf16>
    %112 = vector.shape_cast %111 : vector<1x4x36xbf16> to vector<4x36xbf16>
    %cst_45 = arith.constant dense<0.000000e+00> : vector<4x256xf32>
    %113 = tpu.matmul %112, %110, %cst_45 {dimension_numbers = #tpu.dot_dimension_numbers<[1], [0], [0], [1], [0, 0, 1, 1], [], []>} : vector<4x36xbf16>, vector<36x256xbf16>, vector<4x256xf32> -> vector<4x256xf32>
    %c3_46 = arith.constant 3 : index
    %c0_47 = arith.constant 0 : index
    %c0_48 = arith.constant 0 : index
    %114 = vector.load %arg3[%c3_46, %c0_47, %c0_48] : memref<4x4x1xf32, #tpu.memory_space<vmem>>, vector<1x4x1xf32>
    %115 = vector.shape_cast %114 : vector<1x4x1xf32> to vector<4x1xf32>
    %116 = vector.broadcast %115 : vector<4x1xf32> to vector<4x256xf32>
    %117 = arith.addf %113, %116 : vector<4x256xf32>
    %cst_49 = arith.constant 0.000000e+00 : f32
    %118 = vector.broadcast %cst_49 : f32 to vector<4x256xf32>
    %119 = arith.cmpf oge, %117, %118 : vector<4x256xf32>
    %cst_50 = arith.constant 2.500000e-01 : f32
    %120 = vector.broadcast %cst_50 : f32 to vector<4x256xf32>
    %121 = arith.mulf %120, %117 : vector<4x256xf32>
    %122 = arith.select %119, %117, %121 : vector<4x256xi1>, vector<4x256xf32>
    %123 = arith.truncf %122 : vector<4x256xf32> to vector<4x256xbf16>
    %c0_51 = arith.constant 0 : index
    %c0_52 = arith.constant 0 : index
    %124 = vector.load %arg4[%c0_51, %c0_52] : memref<18x4xbf16, #tpu.memory_space<vmem>>, vector<18x4xbf16>
    %cst_53 = arith.constant dense<0.000000e+00> : vector<18x256xf32>
    %125 = tpu.matmul %124, %123, %cst_53 {dimension_numbers = #tpu.dot_dimension_numbers<[1], [0], [0], [1], [0, 0, 1, 1], [], []>} : vector<18x4xbf16>, vector<4x256xbf16>, vector<18x256xf32> -> vector<18x256xf32>
    %c0_54 = arith.constant 0 : index
    %c0_55 = arith.constant 0 : index
    %126 = vector.load %arg5[%c0_54, %c0_55] : memref<18x1xf32, #tpu.memory_space<vmem>>, vector<18x1xf32>
    %127 = vector.broadcast %126 : vector<18x1xf32> to vector<18x256xf32>
    %128 = arith.addf %125, %127 : vector<18x256xf32>
    %c0_56 = arith.constant 0 : index
    %c0_57 = arith.constant 0 : index
    %c0_58 = arith.constant 0 : index
    %129 = vector.load %arg7[%c0_56, %c0_57, %c0_58] : memref<1x18x256xf32, #tpu.memory_space<vmem>>, vector<1x18x256xf32>
    %130 = vector.shape_cast %129 : vector<1x18x256xf32> to vector<18x256xf32>
    %131 = vector.shape_cast %128 : vector<18x256xf32> to vector<1x18x256xf32>
    tpu.vector_store %arg7[%c0_56, %c0_57, %c0_58], %131 {strides = array<i32>} : memref<1x18x256xf32, #tpu.memory_space<vmem>>, vector<1x18x256xf32>,
    return
  }
  func.func @transform_0(%arg0: i32) -> (i32, i32, i32) {
    %c0_i32 = arith.constant 0 : i32
    %c0_i32_0 = arith.constant 0 : i32
    %c0_i32_1 = arith.constant 0 : i32
    return %arg0, %c0_i32, %c0_i32_0 : i32, i32, i32
  }
  func.func @transform_1(%arg0: i32) -> (i32, i32, i32) {
    %c0_i32 = arith.constant 0 : i32
    %c0_i32_0 = arith.constant 0 : i32
    %c0_i32_1 = arith.constant 0 : i32
    %c0_i32_2 = arith.constant 0 : i32
    return %c0_i32, %c0_i32_0, %c0_i32_1 : i32, i32, i32
  }
  func.func @transform_2(%arg0: i32) -> (i32, i32, i32) {
    %c0_i32 = arith.constant 0 : i32
    %c0_i32_0 = arith.constant 0 : i32
    %c0_i32_1 = arith.constant 0 : i32
    %c0_i32_2 = arith.constant 0 : i32
    return %c0_i32, %c0_i32_0, %c0_i32_1 : i32, i32, i32
  }
  func.func @transform_3(%arg0: i32) -> (i32, i32) {
    %c0_i32 = arith.constant 0 : i32
    %c0_i32_0 = arith.constant 0 : i32
    %c0_i32_1 = arith.constant 0 : i32
    return %c0_i32, %c0_i32_0 : i32, i32
  }
  func.func @transform_4(%arg0: i32) -> (i32, i32) {
    %c0_i32 = arith.constant 0 : i32
    %c0_i32_0 = arith.constant 0 : i32
    %c0_i32_1 = arith.constant 0 : i32
    return %c0_i32, %c0_i32_0 : i32, i32
  }
  func.func @transform_5(%arg0: i32) -> (i32, i32, i32) {
    %c0_i32 = arith.constant 0 : i32
    %c0_i32_0 = arith.constant 0 : i32
    %c0_i32_1 = arith.constant 0 : i32
    %c0_i32_2 = arith.constant 0 : i32
    return %c0_i32, %c0_i32_0, %c0_i32_1 : i32, i32, i32
  }
  func.func @transform_6(%arg0: i32) -> (i32, i32, i32) {
    %c0_i32 = arith.constant 0 : i32
    %c0_i32_0 = arith.constant 0 : i32
    %c0_i32_1 = arith.constant 0 : i32
    return %arg0, %c0_i32, %c0_i32_0 : i32, i32, i32
  }
}

</mosaic_0001>

<llo_original>
// kernel: tpu_custom_call.1
$region0: #{tpu_custom_call.1}
  #allocation0 [shape = 'u32[]', space=smem, size = 0x4, offset = 0x4, fixed_abs, tag = 'smem constant byte address 0x4 - core index']
  #allocation1 [shape = 'u32[72,128]{1,0:T(1,128)}', space=vmem, size = 0x9000, scoped, tag = 'internal scratch']
  %s0 = inlined_call_operand.vmem [shape: f32[2,4,256], index: 0, kind: input, shape index: {}]
  %s1 = inlined_call_operand.vmem [shape: bf16[4,4,36], index: 1, kind: input, shape index: {}]
  %s2 = inlined_call_operand.vmem [shape: f32[4,4,1], index: 2, kind: input, shape index: {}]
  %s3 = inlined_call_operand.vmem [shape: bf16[18,4], index: 3, kind: input, shape index: {}]
  %s4 = inlined_call_operand.vmem [shape: f32[18,1], index: 4, kind: input, shape index: {}]
  %s5 = inlined_call_operand.vmem [shape: f32[2,4,512], index: 5, kind: input, shape index: {}]
  %s6 = inlined_call_operand.vmem [shape: f32[2,18,256], index: 6, kind: output, shape index: {}]
  %s7 = sld [smem:[#allocation0]]
  $region57: #{tpu_custom_call.1} parent=0
    _
  %s9 = ssub.s32 1, %s7
  %s10 = scalar_select 0, %s9, %s7
  loop: start=0, step=1, limit=4
  $region2: #{tpu_custom_call.1} parent=0 // loop_pre_header
    _
  $region3: #{tpu_custom_call.1} parent=0 // loop_header
    %s12 = sphi 0, %s16
    %p13 = scmp.ge.s32.totalorder %s12, 4
    %s22 = sphi 0, %s24
    %s25 = sphi 0, %s22
    %s26 = sphi 0, %s25
    %s42 = sphi 0, %s26
    %s46 = sphi 0, %s46
    %s48 = sphi 0, %s46
    %s49 = sphi 0, %s48
    %s63 = sphi 0, %s49
    %s67 = sphi 0, %s67
    %s69 = sphi 0, %s67
    %s70 = sphi 0, %s69
    %s84 = sphi 0, %s70
    %s88 = sphi 0, %s88
    %s90 = sphi 0, %s88
    %s91 = sphi 0, %s90
    %s105 = sphi 0, %s91
    %s109 = sphi 0, %s109
    %s111 = sphi 0, %s109
    %s112 = sphi 0, %s111
    %s126 = sphi 0, %s112
    %s130 = sphi 0, %s130
    %s132 = sphi 0, %s130
    %s133 = sphi 0, %s132
    %s147 = sphi 0, %s133
    %s153 = sphi 0, %s155
    %s156 = sphi 0, %s153
    %s157 = sphi 0, %s156
    %s173 = sphi 0, %s157
  $region4: #{tpu_custom_call.1} parent=0 // loop_header_branch
    %15 = sbr.rel (%p13) target = $region8
  $region5: #{tpu_custom_call.1} parent=0 // loop_body
    %s17 = ssub.s32 %s12, 1
    %s18 = ssub.s32 %s12, 2
    %s19 = sadd.s32 %s12, 1
    %s20 = ssub.s32 %s12, %s19
    %p21 = scmp.eq.s32.totalorder %s20, 0
    %s23 = sadd.s32 %s22, 1
    %s24 = scalar_select %p21, %s22, %s23
    %p27 = pneg %p21
    %p28 = scmp.eq.s32.totalorder %s12, 1
    %p29 = por %p27, %p28
    %p30 = scmp.ne.s32.totalorder %s22, %s25
    %p31 = scmp.eq.s32.totalorder %s12, 0
    %p32 = por %p30, %p31
    %p33 = scmp.ne.s32.totalorder %s22, %s25
    %p34 = scmp.eq.s32.totalorder %s17, 1
    %p35 = por %p33, %p34
    %p36 = scmp.ne.s32.totalorder %s25, %s26
    %p37 = scmp.eq.s32.totalorder %s17, 0
    %p38 = por %p36, %p37
    %p39 = scmp.ne.s32.totalorder %s25, %s26
    %p40 = scmp.eq.s32.totalorder %s18, 1
    %p41 = por %p39, %p40
    %p43 = scmp.ne.s32.totalorder %s26, %s42
    %p44 = scmp.eq.s32.totalorder %s18, 0
    %p45 = por %p43, %p44
    %s47 = sadd.s32 %s46, 1
    %p50 = scmp.eq.s32.totalorder %s12, 1
    %p51 = scmp.ne.s32.totalorder %s46, %s48
    %p52 = scmp.eq.s32.totalorder %s12, 0
    %p53 = por %p51, %p52
    %p54 = scmp.ne.s32.totalorder %s46, %s48
    %p55 = scmp.eq.s32.totalorder %s17, 1
    %p56 = por %p54, %p55
    %p57 = scmp.ne.s32.totalorder %s48, %s49
    %p58 = scmp.eq.s32.totalorder %s17, 0
    %p59 = por %p57, %p58
    %p60 = scmp.ne.s32.totalorder %s48, %s49
    %p61 = scmp.eq.s32.totalorder %s18, 1
    %p62 = por %p60, %p61
    %p64 = scmp.ne.s32.totalorder %s49, %s63
    %p65 = scmp.eq.s32.totalorder %s18, 0
    %p66 = por %p64, %p65
    %s68 = sadd.s32 %s67, 1
    %p71 = scmp.eq.s32.totalorder %s12, 1
    %p72 = scmp.ne.s32.totalorder %s67, %s69
    %p73 = scmp.eq.s32.totalorder %s12, 0
    %p74 = por %p72, %p73
    %p75 = scmp.ne.s32.totalorder %s67, %s69
    %p76 = scmp.eq.s32.totalorder %s17, 1
    %p77 = por %p75, %p76
    %p78 = scmp.ne.s32.totalorder %s69, %s70
    %p79 = scmp.eq.s32.totalorder %s17, 0
    %p80 = por %p78, %p79
    %p81 = scmp.ne.s32.totalorder %s69, %s70
    %p82 = scmp.eq.s32.totalorder %s18, 1
    %p83 = por %p81, %p82
    %p85 = scmp.ne.s32.totalorder %s70, %s84
    %p86 = scmp.eq.s32.totalorder %s18, 0
    %p87 = por %p85, %p86
    %s89 = sadd.s32 %s88, 1
    %p92 = scmp.eq.s32.totalorder %s12, 1
    %p93 = scmp.ne.s32.totalorder %s88, %s90
    %p94 = scmp.eq.s32.totalorder %s12, 0
    %p95 = por %p93, %p94
    %p96 = scmp.ne.s32.totalorder %s88, %s90
    %p97 = scmp.eq.s32.totalorder %s17, 1
    %p98 = por %p96, %p97
    %p99 = scmp.ne.s32.totalorder %s90, %s91
    %p100 = scmp.eq.s32.totalorder %s17, 0
    %p101 = por %p99, %p100
    %p102 = scmp.ne.s32.totalorder %s90, %s91
    %p103 = scmp.eq.s32.totalorder %s18, 1
    %p104 = por %p102, %p103
    %p106 = scmp.ne.s32.totalorder %s91, %s105
    %p107 = scmp.eq.s32.totalorder %s18, 0
    %p108 = por %p106, %p107
    %s110 = sadd.s32 %s109, 1
    %p113 = scmp.eq.s32.totalorder %s12, 1
    %p114 = scmp.ne.s32.totalorder %s109, %s111
    %p115 = scmp.eq.s32.totalorder %s12, 0
    %p116 = por %p114, %p115
    %p117 = scmp.ne.s32.totalorder %s109, %s111
    %p118 = scmp.eq.s32.totalorder %s17, 1
    %p119 = por %p117, %p118
    %p120 = scmp.ne.s32.totalorder %s111, %s112
    %p121 = scmp.eq.s32.totalorder %s17, 0
    %p122 = por %p120, %p121
    %p123 = scmp.ne.s32.totalorder %s111, %s112
    %p124 = scmp.eq.s32.totalorder %s18, 1
    %p125 = por %p123, %p124
    %p127 = scmp.ne.s32.totalorder %s112, %s126
    %p128 = scmp.eq.s32.totalorder %s18, 0
    %p129 = por %p127, %p128
    %s131 = sadd.s32 %s130, 1
    %p134 = scmp.eq.s32.totalorder %s12, 1
    %p135 = scmp.ne.s32.totalorder %s130, %s132
    %p136 = scmp.eq.s32.totalorder %s12, 0
    %p137 = por %p135, %p136
    %p138 = scmp.ne.s32.totalorder %s130, %s132
    %p139 = scmp.eq.s32.totalorder %s17, 1
    %p140 = por %p138, %p139
    %p141 = scmp.ne.s32.totalorder %s132, %s133
    %p142 = scmp.eq.s32.totalorder %s17, 0
    %p143 = por %p141, %p142
    %p144 = scmp.ne.s32.totalorder %s132, %s133
    %p145 = scmp.eq.s32.totalorder %s18, 1
    %p146 = por %p144, %p145
    %p148 = scmp.ne.s32.totalorder %s133, %s147
    %p149 = scmp.eq.s32.totalorder %s18, 0
    %p150 = por %p148, %p149
    %s151 = ssub.s32 %s12, %s19
    %p152 = scmp.eq.s32.totalorder %s151, 0
    %s154 = sadd.s32 %s153, 1
    %s155 = scalar_select %p152, %s153, %s154
    %p158 = pneg %p152
    %p159 = scmp.eq.s32.totalorder %s12, 1
    %p160 = por %p158, %p159
    %p161 = scmp.ne.s32.totalorder %s153, %s156
    %p162 = scmp.eq.s32.totalorder %s12, 0
    %p163 = por %p161, %p162
    %p164 = scmp.ne.s32.totalorder %s153, %s156
    %p165 = scmp.eq.s32.totalorder %s17, 1
    %p166 = por %p164, %p165
    %p167 = scmp.ne.s32.totalorder %s156, %s157
    %p168 = scmp.eq.s32.totalorder %s17, 0
    %p169 = por %p167, %p168
    %p170 = scmp.ne.s32.totalorder %s156, %s157
    %p171 = scmp.eq.s32.totalorder %s18, 1
    %p172 = por %p170, %p171
    %p174 = scmp.ne.s32.totalorder %s157, %s173
    %p175 = scmp.eq.s32.totalorder %s18, 0
    %p176 = por %p174, %p175
    %p177 = scmp.le.s32.totalorder 1, %s12
    %p178 = scmp.lt.s32.totalorder %s12, 3
    %p179 = pnand %p177, %p178
    %p180 = pneg %p179
    // Predicated region
    $region9: #{tpu_custom_call.1} parent=5 // pred_check
      _
    $region10: #{tpu_custom_call.1} parent=5 // pred_check_branch
      %182 = sbr.rel (%p179) target = $region12
    $region11: #{tpu_custom_call.1} parent=5 // pred_region
      %s183 = ssub.s32 %s12, 1
      // Predicated region
      $region13: #{tpu_custom_call.1} parent=11 // pred_check
        %p184 = pneg %p59
      $region14: #{tpu_custom_call.1} parent=11 // pred_check_branch
        %186 = sbr.rel (%p184) target = $region16
      $region15: #{tpu_custom_call.1} parent=11 // pred_region
        _
      $region16: #{tpu_custom_call.1} parent=11 // pred_fallthru
        _
      // Predicated region
      $region17: #{tpu_custom_call.1} parent=11 // pred_check
        %p187 = pneg %p80
      $region18: #{tpu_custom_call.1} parent=11 // pred_check_branch
        %189 = sbr.rel (%p187) target = $region20
      $region19: #{tpu_custom_call.1} parent=11 // pred_region
        _
      $region20: #{tpu_custom_call.1} parent=11 // pred_fallthru
        _
      // Predicated region
      $region21: #{tpu_custom_call.1} parent=11 // pred_check
        %p190 = pneg %p101
      $region22: #{tpu_custom_call.1} parent=11 // pred_check_branch
        %192 = sbr.rel (%p190) target = $region24
      $region23: #{tpu_custom_call.1} parent=11 // pred_region
        _
      $region24: #{tpu_custom_call.1} parent=11 // pred_fallthru
        _
      // Predicated region
      $region25: #{tpu_custom_call.1} parent=11 // pred_check
        %p193 = pneg %p122
      $region26: #{tpu_custom_call.1} parent=11 // pred_check_branch
        %195 = sbr.rel (%p193) target = $region28
      $region27: #{tpu_custom_call.1} parent=11 // pred_region
        _
      $region28: #{tpu_custom_call.1} parent=11 // pred_fallthru
        _
      // Predicated region
      $region29: #{tpu_custom_call.1} parent=11 // pred_check
        %p196 = pneg %p143
      $region30: #{tpu_custom_call.1} parent=11 // pred_check_branch
        %198 = sbr.rel (%p196) target = $region32
      $region31: #{tpu_custom_call.1} parent=11 // pred_region
        _
      $region32: #{tpu_custom_call.1} parent=11 // pred_fallthru
        _
    $region12: #{tpu_custom_call.1} parent=5 // pred_fallthru
      _
    %p199 = scmp.lt.s32.totalorder %s12, 2
    // Predicated region
    $region33: #{tpu_custom_call.1} parent=5 // pred_check
      %p200 = pneg %p199
    $region34: #{tpu_custom_call.1} parent=5 // pred_check_branch
      %202 = sbr.rel (%p200) target = $region36
    $region35: #{tpu_custom_call.1} parent=5 // pred_region
      // Predicated region
      $region37: #{tpu_custom_call.1} parent=35 // pred_check
        %p203 = pneg %p32
      $region38: #{tpu_custom_call.1} parent=35 // pred_check_branch
        %205 = sbr.rel (%p203) target = $region40
      $region39: #{tpu_custom_call.1} parent=35 // pred_region
        %p206 = scmp.lt.s32.totalorder %s12, 1
        %s207 = scalar_select %p206, %s12, 1
        %s208 = smul.addr %s207, 2
        %s209 = smul.addr %s208, 4
        %s210 = scalar_lea.vmem %s0, %s209
      $region40: #{tpu_custom_call.1} parent=35 // pred_fallthru
        _
    $region36: #{tpu_custom_call.1} parent=5 // pred_fallthru
      _
    %p211 = scmp.le.s32.totalorder 1, %s12
    %p212 = scmp.lt.s32.totalorder %s12, 3
    %p213 = pnand %p211, %p212
    %p214 = pneg %p213
    // Predicated region
    $region41: #{tpu_custom_call.1} parent=5 // pred_check
      _
    $region42: #{tpu_custom_call.1} parent=5 // pred_check_branch
      %216 = sbr.rel (%p213) target = $region44
    $region43: #{tpu_custom_call.1} parent=5 // pred_region
      %s217 = ssub.s32 %s12, 1
      %p218 = scmp.lt.s32.totalorder %s17, 1
      %s219 = scalar_select %p218, %s17, 1
      %s220 = smul.addr %s219, 2
      %s221 = smul.addr %s220, 4
      %s222 = scalar_lea.vmem %s0, %s221
      %p223 = pneg %p38
      %p224 = pneg %p35
      %p225 = pneg %p59
      %p226 = pneg %p56
      %p227 = pneg %p80
      %p228 = pneg %p77
      %p229 = pneg %p101
      %p230 = pneg %p98
      %p231 = pneg %p122
      %p232 = pneg %p119
      %p233 = pneg %p143
      %p234 = pneg %p140
      %p235 = pneg %p169
      %p236 = pneg %p166
      %p237 = scmp.lt.s32.totalorder %s17, 1
      %s238 = scalar_select %p237, %s17, 1
      %s239 = smul.addr %s238, 6
      %s240 = smul.addr %s239, 8
      %s241 = scalar_lea.vmem %s6, %s240
      %p242 = scmp.lt.s32.totalorder %s17, 1
      %s243 = scalar_select %p242, %s17, 1
      %s244 = smul.addr %s243, 2
      %s245 = smul.addr %s244, 4
      %s246 = scalar_lea.vmem %s0, %s245
      %p247 = scmp.lt.s32.totalorder %s17, 1
      %s248 = scalar_select %p247, %s17, 1
      %s249 = smul.addr %s248, 6
      %s250 = smul.addr %s249, 8
      %s251 = scalar_lea.vmem %s6, %s250
      %v255 = vld [vmem:[%s5] sm:$0xff]
      %v256 = vld [vmem:[%s5 + $0x8] sm:$0xff]
      %vm257 = vcmp.gt.f32.partialorder %v255, 0.5
      %vm258 = vcmp.gt.f32.partialorder %v256, 0.5
      %s259 = scalar_lea.vmem %s5, 16
      %v260 = vld [vmem:[%s259] sm:$0xff]
      %v261 = vld [vmem:[%s259 + $0x8] sm:$0xff]
      %vm262 = vcmp.gt.f32.partialorder %v260, 0.5
      %vm263 = vcmp.gt.f32.partialorder %v261, 0.5
      %v264 = vld [vmem:[%s246] sm:$0xff]
      %266 = vst [vmem:[#allocation1] ss:$2 sm:$0xff] %v264
      %v267 = vld.sshfl [vmem:[#allocation1] sm:$0xff pattern:$0x75316420]
      %v268 = vld.sshfl [vmem:[#allocation1 + $0x8] sm:$0xff pattern:$0x75316420]
      %v271 = vpack.c.bf16 %v268, %v267
      %v273 = vunpack.c.l.b16 %v271
      %v274 = vunpack.c.h.b16 %v271
      %v275 = vpack.c.b16 %v273, %v273
      %v276 = vpack.c.b16 %v274, %v274
      %v279 = vsel %vm257, 1, 0
      %v280 = vsel %vm258, 1, 0
      %v281 = vpack.c.b16 %v280, %v279
      %v282 = vunpack.c.l.b16 %v281
      %v283 = vunpack.c.h.b16 %v281
      %v284 = vunpack.c.l.b16 0
      %v285 = vunpack.c.h.b16 0
      %vm286 = vcmp.ne.s32.totalorder %v282, %v284
      %vm287 = vcmp.ne.s32.totalorder %v283, %v285
      %vm288 = vmpackc.low %vm287, %vm286
      %v289 = vsel %vm288, 65537, 0
      %291 = vst [vmem:[#allocation1] ss:$4 sm:$0xff] %v289
      %v292 = vld.sshfl [vmem:[#allocation1 + $0x8] sm:$0xff pattern:$0x73625140]
      %v294 = vld.sshfl [vmem:[#allocation1 + $0x10] sm:$0xff pattern:$0x73625140]
      %v296 = vunpack.c.l.b16 %v292
      %v297 = vunpack.c.h.b16 %v292
      %v298 = vunpack.c.l.b16 0
      %v299 = vunpack.c.h.b16 0
      %vm300 = vcmp.ne.s32.totalorder %v296, %v298
      %vm301 = vcmp.ne.s32.totalorder %v297, %v299
      %vm302 = vmpackc.low %vm301, %vm300
      %v303 = vunpack.c.l.b16 %v294
      %v304 = vunpack.c.h.b16 %v294
      %v305 = vunpack.c.l.b16 0
      %v306 = vunpack.c.h.b16 0
      %vm307 = vcmp.ne.s32.totalorder %v303, %v305
      %vm308 = vcmp.ne.s32.totalorder %v304, %v306
      %vm309 = vmpackc.low %vm308, %vm307
      %v310 = vsel %vm302, %v275, 0
      %v311 = vsel %vm309, %v276, 0
      %v312 = vsel %vm262, 1, 0
      %v313 = vsel %vm263, 1, 0
      %v314 = vpack.c.b16 %v313, %v312
      %v315 = vunpack.c.l.b16 %v314
      %v316 = vunpack.c.h.b16 %v314
      %v317 = vunpack.c.l.b16 0
      %v318 = vunpack.c.h.b16 0
      %vm319 = vcmp.ne.s32.totalorder %v315, %v317
      %vm320 = vcmp.ne.s32.totalorder %v316, %v318
      %vm321 = vmpackc.low %vm320, %vm319
      %v322 = vsel %vm321, 65537, 0
      %324 = vst [vmem:[#allocation1] ss:$4 sm:$0xff] %v322
      %v325 = vld.sshfl [vmem:[#allocation1 + $0x8] sm:$0xff pattern:$0x73625140]
      %v327 = vld.sshfl [vmem:[#allocation1 + $0x10] sm:$0xff pattern:$0x73625140]
      %v329 = vunpack.c.l.b16 %v325
      %v330 = vunpack.c.h.b16 %v325
      %v331 = vunpack.c.l.b16 0
      %v332 = vunpack.c.h.b16 0
      %vm333 = vcmp.ne.s32.totalorder %v329, %v331
      %vm334 = vcmp.ne.s32.totalorder %v330, %v332
      %vm335 = vmpackc.low %vm334, %vm333
      %v336 = vunpack.c.l.b16 %v327
      %v337 = vunpack.c.h.b16 %v327
      %v338 = vunpack.c.l.b16 0
      %v339 = vunpack.c.h.b16 0
      %vm340 = vcmp.ne.s32.totalorder %v336, %v338
      %vm341 = vcmp.ne.s32.totalorder %v337, %v339
      %vm342 = vmpackc.low %vm341, %vm340
      %v343 = vsel %vm335, %v275, 0
      %v344 = vsel %vm342, %v276, 0
      %v346 = vrot.slane 0, 6
      %v347 = vrot.slane %v275, 6
      %v348 = vrot.slane %v276, 6
      %349 = vrot.lane.b32.xlu0 %v346, 127
      %v350 = vpop.permute.xlu0 %349
      %351 = vrot.lane.b32.xlu0 %v347, 127
      %v352 = vpop.permute.xlu0 %351
      %353 = vrot.lane.b32.xlu0 %v348, 127
      %v354 = vpop.permute.xlu0 %353
      %vm355 = vcmask 1039360
      %v356 = vsel %vm355, %v350, %v352
      %v357 = vsel %vm355, %v352, %v354
      %v360 = vrot.slane 0, 4
      %v361 = vrot.slane %v343, 4
      %v362 = vrot.slane %v344, 4
      %363 = vrot.lane.b32.xlu0 %v360, 126
      %v364 = vpop.permute.xlu0 %363
      %365 = vrot.lane.b32.xlu0 %v361, 126
      %v366 = vpop.permute.xlu0 %365
      %367 = vrot.lane.b32.xlu0 %v362, 126
      %v368 = vpop.permute.xlu0 %367
      %vm369 = vcmask 1031168
      %v370 = vsel %vm369, %v364, %v366
      %v371 = vsel %vm369, %v366, %v368
      %v374 = vrot.slane 0, 2
      %v375 = vrot.slane %v310, 2
      %v376 = vrot.slane %v311, 2
      %377 = vrot.lane.b32.xlu0 %v374, 112
      %v378 = vpop.permute.xlu0 %377
      %379 = vrot.lane.b32.xlu0 %v375, 112
      %v380 = vpop.permute.xlu0 %379
      %381 = vrot.lane.b32.xlu0 %v376, 112
      %v382 = vpop.permute.xlu0 %381
      %vm383 = vcmask 916480
      %v384 = vsel %vm383, %v378, %v380
      %v385 = vsel %vm383, %v380, %v382
      %386 = vrot.lane.b32.xlu0 %v275, 111
      %v387 = vpop.permute.xlu0 %386
      %388 = vrot.lane.b32.xlu0 %v276, 111
      %v389 = vpop.permute.xlu0 %388
      %vm390 = vcmask 908288
      %v391 = vsel %vm390, %v387, %v389
      %v392 = vrot.slane %v343, 6
      %v393 = vrot.slane %v344, 6
      %394 = vrot.lane.b32.xlu0 %v392, 110
      %v395 = vpop.permute.xlu0 %394
      %396 = vrot.lane.b32.xlu0 %v393, 110
      %v397 = vpop.permute.xlu0 %396
      %398 = vrot.lane.b32.xlu0 %v346, 110
      %v399 = vpop.permute.xlu0 %398
      %vm400 = vcmask 900096
      %v401 = vsel %vm400, %v395, %v397
      %v402 = vsel %vm400, %v397, %v399
      %v403 = vrot.slane %v310, 4
      %v404 = vrot.slane %v311, 4
      %405 = vrot.lane.b32.xlu0 %v403, 96
      %v406 = vpop.permute.xlu0 %405
      %407 = vrot.lane.b32.xlu0 %v404, 96
      %v408 = vpop.permute.xlu0 %407
      %409 = vrot.lane.b32.xlu0 %v360, 96
      %v410 = vpop.permute.xlu0 %409
      %vm411 = vcmask 785408
      %v412 = vsel %vm411, %v406, %v408
      %v413 = vsel %vm411, %v408, %v410
      %v414 = vrot.slane %v275, 2
      %v415 = vrot.slane %v276, 2
      %416 = vrot.lane.b32.xlu0 %v414, 95
      %v417 = vpop.permute.xlu0 %416
      %418 = vrot.lane.b32.xlu0 %v415, 95
      %v419 = vpop.permute.xlu0 %418
      %420 = vrot.lane.b32.xlu0 %v374, 95
      %v421 = vpop.permute.xlu0 %420
      %vm422 = vcmask 777216
      %v423 = vsel %vm422, %v417, %v419
      %v424 = vsel %vm422, %v419, %v421
      %425 = vrot.lane.b32.xlu0 %v343, 94
      %v426 = vpop.permute.xlu0 %425
      %427 = vrot.lane.b32.xlu0 %v344, 94
      %v428 = vpop.permute.xlu0 %427
      %429 = vrot.lane.b32.xlu0 0, 94
      %v430 = vpop.permute.xlu0 %429
      %vm431 = vcmask 769024
      %v432 = vsel %vm431, %v426, %v428
      %v433 = vsel %vm431, %v428, %v430
      %vm434 = vcmask 1041408
      %v437 = vsel %vm434, 0, %v356
      %v440 = vsel %vm434, %v310, %v357
      %v443 = vsel %vm434, %v311, %v354
      %vm444 = vcmask 1043456
      %v446 = vsel %vm444, %v437, %v370
      %v448 = vsel %vm444, %v440, %v371
      %v450 = vsel %vm444, %v443, %v368
      %vm451 = vcmask 1045504
      %v453 = vsel %vm451, %v446, %v384
      %v455 = vsel %vm451, %v448, %v385
      %v457 = vsel %vm451, %v450, %v382
      %v460 = vsel %vm434, %v387, %v395
      %v463 = vsel %vm434, %v391, %v401
      %v466 = vsel %vm434, %v389, %v402
      %v468 = vsel %vm444, %v460, %v406
      %v470 = vsel %vm444, %v463, %v412
      %v472 = vsel %vm444, %v466, %v413
      %v474 = vsel %vm451, %v468, %v417
      %v476 = vsel %vm451, %v470, %v423
      %v478 = vsel %vm451, %v472, %v424
      %v479 = vld [vmem:[%s1] sm:$0x3]
      %v480 = vld [vmem:[%s2] sm:$0xf]
      %482 = vset.pattern.permute.xlu0 0
      %483 = vperm.xlu0 %482, %v480
      %v484 = vpop.permute.xlu0 %483
      %492 = vrot.lane.b32.xlu0 %v453, 17
      %v493 = vpop.permute.xlu0 %492
      %494 = vrot.lane.b32.xlu0 %v455, 17
      %v495 = vpop.permute.xlu0 %494
      %496 = vrot.lane.b32.xlu0 %v457, 17
      %v497 = vpop.permute.xlu0 %496
      %498 = vrot.lane.b32.xlu0 %v474, 17
      %v499 = vpop.permute.xlu0 %498
      %500 = vrot.lane.b32.xlu0 %v476, 17
      %v501 = vpop.permute.xlu0 %500
      %502 = vrot.lane.b32.xlu0 %v478, 17
      %v503 = vpop.permute.xlu0 %502
      %504 = vrot.lane.b32.xlu0 %v426, 17
      %v505 = vpop.permute.xlu0 %504
      %506 = vrot.lane.b32.xlu0 %v432, 17
      %v507 = vpop.permute.xlu0 %506
      %508 = vrot.lane.b32.xlu0 %v433, 17
      %v509 = vpop.permute.xlu0 %508
      %vm510 = vcmask 138240
      %v511 = vsel %vm510, %v493, %v495
      %v512 = vsel %vm510, %v495, %v497
      %v513 = vsel %vm510, %v499, %v501
      %v514 = vsel %vm510, %v501, %v503
      %v515 = vsel %vm510, %v505, %v507
      %v516 = vsel %vm510, %v507, %v509
      %vm521 = vcmask 293888
      %v523 = vsel %vm521, %v479, 0
      %v526 = vsel %vm434, %v515, 0
      %v529 = vsel %vm434, %v516, 0
      %531 = vmatpush.bf16.msra.mxu0 0
      %532 = vmatpush.bf16.msra.mxu0 0
      %533 = vmatpush.bf16.msra.mxu0 0
      %534 = vmatpush.bf16.msra.mxu0 0
      %535 = vmatpush.bf16.msra.mxu0 0
      %536 = vmatpush.bf16.msra.mxu0 %v526
      %537 = vmatpush.bf16.msra.mxu0 %v513
      %538 = vmatpush.bf16.msra.mxu0 %v511
      %539 = vmatmul.bf16.gmra.mxu0 %v523
      %v540 = vpop.f32.mrf.mxu0
      %v541 = vadd.f32 %v484, %v540
      %v542 = vpop.f32.mrf.mxu0
      %543 = vdwg.mxu0
      %544 = vmatpush.bf16.msra.mxu0 0
      %545 = vmatpush.bf16.msra.mxu0 0
      %546 = vmatpush.bf16.msra.mxu0 0
      %547 = vmatpush.bf16.msra.mxu0 0
      %548 = vmatpush.bf16.msra.mxu0 0
      %549 = vmatpush.bf16.msra.mxu0 %v529
      %550 = vmatpush.bf16.msra.mxu0 %v514
      %551 = vmatpush.bf16.msra.mxu0 %v512
      %552 = vmatmul.bf16.gmra.mxu0 %v523
      %v553 = vpop.f32.mrf.mxu0
      %v554 = vadd.f32 %v484, %v553
      %v555 = vpop.f32.mrf.mxu0
      %556 = vdwg.mxu0
      %vm557 = vcmp.ge.f32.partialorder %v541, 0.0
      %vm558 = vcmp.ge.f32.partialorder %v554, 0.0
      %v559 = vmul.f32 %v541, 0.25
      %v560 = vmul.f32 %v554, 0.25
      %v561 = vsel %vm557, %v541, %v559
      %v562 = vsel %vm558, %v554, %v560
      %v563 = vpack.c.bf16 %v562, %v561
      %v565 = vunpack.c.l.b16 %v563
      %v566 = vunpack.c.h.b16 %v563
      %v567 = vpack.c.b16 %v565, %v565
      %v568 = vpack.c.b16 %v566, %v566
      %571 = vst [vmem:[#allocation1] ss:$4 sm:$0xff] %v289
      %v572 = vld.sshfl [vmem:[#allocation1 + $0x8] sm:$0xff pattern:$0x73625140]
      %v574 = vld.sshfl [vmem:[#allocation1 + $0x10] sm:$0xff pattern:$0x73625140]
      %v576 = vunpack.c.l.b16 %v572
      %v577 = vunpack.c.h.b16 %v572
      %v578 = vunpack.c.l.b16 0
      %v579 = vunpack.c.h.b16 0
      %vm580 = vcmp.ne.s32.totalorder %v576, %v578
      %vm581 = vcmp.ne.s32.totalorder %v577, %v579
      %vm582 = vmpackc.low %vm581, %vm580
      %v583 = vunpack.c.l.b16 %v574
      %v584 = vunpack.c.h.b16 %v574
      %v585 = vunpack.c.l.b16 0
      %v586 = vunpack.c.h.b16 0
      %vm587 = vcmp.ne.s32.totalorder %v583, %v585
      %vm588 = vcmp.ne.s32.totalorder %v584, %v586
      %vm589 = vmpackc.low %vm588, %vm587
      %v590 = vsel %vm582, %v567, 0
      %v591 = vsel %vm589, %v568, 0
      %592 = vst [vmem:[#allocation1] ss:$4 sm:$0xff] %v322
      %v593 = vld.sshfl [vmem:[#allocation1 + $0x8] sm:$0xff pattern:$0x73625140]
      %v595 = vld.sshfl [vmem:[#allocation1 + $0x10] sm:$0xff pattern:$0x73625140]
      %v597 = vunpack.c.l.b16 %v593
      %v598 = vunpack.c.h.b16 %v593
      %v599 = vunpack.c.l.b16 0
      %v600 = vunpack.c.h.b16 0
      %vm601 = vcmp.ne.s32.totalorder %v597, %v599
      %vm602 = vcmp.ne.s32.totalorder %v598, %v600
      %vm603 = vmpackc.low %vm602, %vm601
      %v604 = vunpack.c.l.b16 %v595
      %v605 = vunpack.c.h.b16 %v595
      %v606 = vunpack.c.l.b16 0
      %v607 = vunpack.c.h.b16 0
      %vm608 = vcmp.ne.s32.totalorder %v604, %v606
      %vm609 = vcmp.ne.s32.totalorder %v605, %v607
      %vm610 = vmpackc.low %vm609, %vm608
      %v611 = vsel %vm603, %v567, 0
      %v612 = vsel %vm610, %v568, 0
      %v613 = vrot.slane %v567, 6
      %v614 = vrot.slane %v568, 6
      %615 = vrot.lane.b32.xlu0 %v613, 127
      %v616 = vpop.permute.xlu0 %615
      %617 = vrot.lane.b32.xlu0 %v614, 127
      %v618 = vpop.permute.xlu0 %617
      %v619 = vsel %vm355, %v350, %v616
      %v620 = vsel %vm355, %v616, %v618
      %v623 = vrot.slane %v611, 4
      %v624 = vrot.slane %v612, 4
      %625 = vrot.lane.b32.xlu0 %v623, 126
      %v626 = vpop.permute.xlu0 %625
      %627 = vrot.lane.b32.xlu0 %v624, 126
      %v628 = vpop.permute.xlu0 %627
      %v629 = vsel %vm369, %v364, %v626
      %v630 = vsel %vm369, %v626, %v628
      %v633 = vrot.slane %v590, 2
      %v634 = vrot.slane %v591, 2
      %635 = vrot.lane.b32.xlu0 %v633, 112
      %v636 = vpop.permute.xlu0 %635
      %637 = vrot.lane.b32.xlu0 %v634, 112
      %v638 = vpop.permute.xlu0 %637
      %v639 = vsel %vm383, %v378, %v636
      %v640 = vsel %vm383, %v636, %v638
      %641 = vrot.lane.b32.xlu0 %v567, 111
      %v642 = vpop.permute.xlu0 %641
      %643 = vrot.lane.b32.xlu0 %v568, 111
      %v644 = vpop.permute.xlu0 %643
      %v645 = vsel %vm390, %v642, %v644
      %v646 = vrot.slane %v611, 6
      %v647 = vrot.slane %v612, 6
      %648 = vrot.lane.b32.xlu0 %v646, 110
      %v649 = vpop.permute.xlu0 %648
      %650 = vrot.lane.b32.xlu0 %v647, 110
      %v651 = vpop.permute.xlu0 %650
      %v652 = vsel %vm400, %v649, %v651
      %v653 = vsel %vm400, %v651, %v399
      %v654 = vrot.slane %v590, 4
      %v655 = vrot.slane %v591, 4
      %656 = vrot.lane.b32.xlu0 %v654, 96
      %v657 = vpop.permute.xlu0 %656
      %658 = vrot.lane.b32.xlu0 %v655, 96
      %v659 = vpop.permute.xlu0 %658
      %v660 = vsel %vm411, %v657, %v659
      %v661 = vsel %vm411, %v659, %v410
      %v662 = vrot.slane %v567, 2
      %v663 = vrot.slane %v568, 2
      %664 = vrot.lane.b32.xlu0 %v662, 95
      %v665 = vpop.permute.xlu0 %664
      %666 = vrot.lane.b32.xlu0 %v663, 95
      %v667 = vpop.permute.xlu0 %666
      %v668 = vsel %vm422, %v665, %v667
      %v669 = vsel %vm422, %v667, %v421
      %670 = vrot.lane.b32.xlu0 %v611, 94
      %v671 = vpop.permute.xlu0 %670
      %672 = vrot.lane.b32.xlu0 %v612, 94
      %v673 = vpop.permute.xlu0 %672
      %v674 = vsel %vm431, %v671, %v673
      %v675 = vsel %vm431, %v673, %v430
      %v677 = vsel %vm434, 0, %v619
      %v680 = vsel %vm434, %v590, %v620
      %v683 = vsel %vm434, %v591, %v618
      %v685 = vsel %vm444, %v677, %v629
      %v687 = vsel %vm444, %v680, %v630
      %v689 = vsel %vm444, %v683, %v628
      %v691 = vsel %vm451, %v685, %v639
      %v693 = vsel %vm451, %v687, %v640
      %v695 = vsel %vm451, %v689, %v638
      %v698 = vsel %vm434, %v642, %v649
      %v701 = vsel %vm434, %v645, %v652
      %v704 = vsel %vm434, %v644, %v653
      %v706 = vsel %vm444, %v698, %v657
      %v708 = vsel %vm444, %v701, %v660
      %v710 = vsel %vm444, %v704, %v661
      %v712 = vsel %vm451, %v706, %v665
      %v714 = vsel %vm451, %v708, %v668
      %v716 = vsel %vm451, %v710, %v669
      %s717 = scalar_lea.vmem %s1, 2
      %v718 = vld [vmem:[%s717] sm:$0x3]
      %s719 = scalar_lea.vmem %s2, 4
      %v720 = vld [vmem:[%s719] sm:$0xf]
      %722 = vset.pattern.permute.xlu0 0
      %723 = vperm.xlu0 %722, %v720
      %v724 = vpop.permute.xlu0 %723
      %732 = vrot.lane.b32.xlu0 %v691, 17
      %v733 = vpop.permute.xlu0 %732
      %734 = vrot.lane.b32.xlu0 %v693, 17
      %v735 = vpop.permute.xlu0 %734
      %736 = vrot.lane.b32.xlu0 %v695, 17
      %v737 = vpop.permute.xlu0 %736
      %738 = vrot.lane.b32.xlu0 %v712, 17
      %v739 = vpop.permute.xlu0 %738
      %740 = vrot.lane.b32.xlu0 %v714, 17
      %v741 = vpop.permute.xlu0 %740
      %742 = vrot.lane.b32.xlu0 %v716, 17
      %v743 = vpop.permute.xlu0 %742
      %744 = vrot.lane.b32.xlu0 %v671, 17
      %v745 = vpop.permute.xlu0 %744
      %746 = vrot.lane.b32.xlu0 %v674, 17
      %v747 = vpop.permute.xlu0 %746
      %748 = vrot.lane.b32.xlu0 %v675, 17
      %v749 = vpop.permute.xlu0 %748
      %v750 = vsel %vm510, %v733, %v735
      %v751 = vsel %vm510, %v735, %v737
      %v752 = vsel %vm510, %v739, %v741
      %v753 = vsel %vm510, %v741, %v743
      %v754 = vsel %vm510, %v745, %v747
      %v755 = vsel %vm510, %v747, %v749
      %v761 = vsel %vm521, %v718, 0
      %v764 = vsel %vm434, %v754, 0
      %v767 = vsel %vm434, %v755, 0
      %769 = vmatpush.bf16.msra.mxu0 0
      %770 = vmatpush.bf16.msra.mxu0 0
      %771 = vmatpush.bf16.msra.mxu0 0
      %772 = vmatpush.bf16.msra.mxu0 0
      %773 = vmatpush.bf16.msra.mxu0 0
      %774 = vmatpush.bf16.msra.mxu0 %v764
      %775 = vmatpush.bf16.msra.mxu0 %v752
      %776 = vmatpush.bf16.msra.mxu0 %v750
      %777 = vmatmul.bf16.gmra.mxu0 %v761
      %v778 = vpop.f32.mrf.mxu0
      %v779 = vadd.f32 %v724, %v778
      %v780 = vpop.f32.mrf.mxu0
      %781 = vdwg.mxu0
      %782 = vmatpush.bf16.msra.mxu0 0
      %783 = vmatpush.bf16.msra.mxu0 0
      %784 = vmatpush.bf16.msra.mxu0 0
      %785 = vmatpush.bf16.msra.mxu0 0
      %786 = vmatpush.bf16.msra.mxu0 0
      %787 = vmatpush.bf16.msra.mxu0 %v767
      %788 = vmatpush.bf16.msra.mxu0 %v753
      %789 = vmatpush.bf16.msra.mxu0 %v751
      %790 = vmatmul.bf16.gmra.mxu0 %v761
      %v791 = vpop.f32.mrf.mxu0
      %v792 = vadd.f32 %v724, %v791
      %v793 = vpop.f32.mrf.mxu0
      %794 = vdwg.mxu0
      %vm795 = vcmp.ge.f32.partialorder %v779, 0.0
      %vm796 = vcmp.ge.f32.partialorder %v792, 0.0
      %v797 = vmul.f32 %v779, 0.25
      %v798 = vmul.f32 %v792, 0.25
      %v799 = vsel %vm795, %v779, %v797
      %v800 = vsel %vm796, %v792, %v798
      %v801 = vpack.c.bf16 %v800, %v799
      %v803 = vunpack.c.l.b16 %v801
      %v804 = vunpack.c.h.b16 %v801
      %v805 = vpack.c.b16 %v803, %v803
      %v806 = vpack.c.b16 %v804, %v804
      %809 = vst [vmem:[#allocation1] ss:$4 sm:$0xff] %v289
      %v810 = vld.sshfl [vmem:[#allocation1 + $0x8] sm:$0xff pattern:$0x73625140]
      %v812 = vld.sshfl [vmem:[#allocation1 + $0x10] sm:$0xff pattern:$0x73625140]
      %v814 = vunpack.c.l.b16 %v810
      %v815 = vunpack.c.h.b16 %v810
      %v816 = vunpack.c.l.b16 0
      %v817 = vunpack.c.h.b16 0
      %vm818 = vcmp.ne.s32.totalorder %v814, %v816
      %vm819 = vcmp.ne.s32.totalorder %v815, %v817
      %vm820 = vmpackc.low %vm819, %vm818
      %v821 = vunpack.c.l.b16 %v812
      %v822 = vunpack.c.h.b16 %v812
      %v823 = vunpack.c.l.b16 0
      %v824 = vunpack.c.h.b16 0
      %vm825 = vcmp.ne.s32.totalorder %v821, %v823
      %vm826 = vcmp.ne.s32.totalorder %v822, %v824
      %vm827 = vmpackc.low %vm826, %vm825
      %v828 = vsel %vm820, %v805, 0
      %v829 = vsel %vm827, %v806, 0
      %830 = vst [vmem:[#allocation1] ss:$4 sm:$0xff] %v322
      %v831 = vld.sshfl [vmem:[#allocation1 + $0x8] sm:$0xff pattern:$0x73625140]
      %v833 = vld.sshfl [vmem:[#allocation1 + $0x10] sm:$0xff pattern:$0x73625140]
      %v835 = vunpack.c.l.b16 %v831
      %v836 = vunpack.c.h.b16 %v831
      %v837 = vunpack.c.l.b16 0
      %v838 = vunpack.c.h.b16 0
      %vm839 = vcmp.ne.s32.totalorder %v835, %v837
      %vm840 = vcmp.ne.s32.totalorder %v836, %v838
      %vm841 = vmpackc.low %vm840, %vm839
      %v842 = vunpack.c.l.b16 %v833
      %v843 = vunpack.c.h.b16 %v833
      %v844 = vunpack.c.l.b16 0
      %v845 = vunpack.c.h.b16 0
      %vm846 = vcmp.ne.s32.totalorder %v842, %v844
      %vm847 = vcmp.ne.s32.totalorder %v843, %v845
      %vm848 = vmpackc.low %vm847, %vm846
      %v849 = vsel %vm841, %v805, 0
      %v850 = vsel %vm848, %v806, 0
      %v851 = vrot.slane %v805, 6
      %v852 = vrot.slane %v806, 6
      %853 = vrot.lane.b32.xlu0 %v851, 127
      %v854 = vpop.permute.xlu0 %853
      %855 = vrot.lane.b32.xlu0 %v852, 127
      %v856 = vpop.permute.xlu0 %855
      %v857 = vsel %vm355, %v350, %v854
      %v858 = vsel %vm355, %v854, %v856
      %v861 = vrot.slane %v849, 4
      %v862 = vrot.slane %v850, 4
      %863 = vrot.lane.b32.xlu0 %v861, 126
      %v864 = vpop.permute.xlu0 %863
      %865 = vrot.lane.b32.xlu0 %v862, 126
      %v866 = vpop.permute.xlu0 %865
      %v867 = vsel %vm369, %v364, %v864
      %v868 = vsel %vm369, %v864, %v866
      %v871 = vrot.slane %v828, 2
      %v872 = vrot.slane %v829, 2
      %873 = vrot.lane.b32.xlu0 %v871, 112
      %v874 = vpop.permute.xlu0 %873
      %875 = vrot.lane.b32.xlu0 %v872, 112
      %v876 = vpop.permute.xlu0 %875
      %v877 = vsel %vm383, %v378, %v874
      %v878 = vsel %vm383, %v874, %v876
      %879 = vrot.lane.b32.xlu0 %v805, 111
      %v880 = vpop.permute.xlu0 %879
      %881 = vrot.lane.b32.xlu0 %v806, 111
      %v882 = vpop.permute.xlu0 %881
      %v883 = vsel %vm390, %v880, %v882
      %v884 = vrot.slane %v849, 6
      %v885 = vrot.slane %v850, 6
      %886 = vrot.lane.b32.xlu0 %v884, 110
      %v887 = vpop.permute.xlu0 %886
      %888 = vrot.lane.b32.xlu0 %v885, 110
      %v889 = vpop.permute.xlu0 %888
      %v890 = vsel %vm400, %v887, %v889
      %v891 = vsel %vm400, %v889, %v399
      %v892 = vrot.slane %v828, 4
      %v893 = vrot.slane %v829, 4
      %894 = vrot.lane.b32.xlu0 %v892, 96
      %v895 = vpop.permute.xlu0 %894
      %896 = vrot.lane.b32.xlu0 %v893, 96
      %v897 = vpop.permute.xlu0 %896
      %v898 = vsel %vm411, %v895, %v897
      %v899 = vsel %vm411, %v897, %v410
      %v900 = vrot.slane %v805, 2
      %v901 = vrot.slane %v806, 2
      %902 = vrot.lane.b32.xlu0 %v900, 95
      %v903 = vpop.permute.xlu0 %902
      %904 = vrot.lane.b32.xlu0 %v901, 95
      %v905 = vpop.permute.xlu0 %904
      %v906 = vsel %vm422, %v903, %v905
      %v907 = vsel %vm422, %v905, %v421
      %908 = vrot.lane.b32.xlu0 %v849, 94
      %v909 = vpop.permute.xlu0 %908
      %910 = vrot.lane.b32.xlu0 %v850, 94
      %v911 = vpop.permute.xlu0 %910
      %v912 = vsel %vm431, %v909, %v911
      %v913 = vsel %vm431, %v911, %v430
      %v915 = vsel %vm434, 0, %v857
      %v918 = vsel %vm434, %v828, %v858
      %v921 = vsel %vm434, %v829, %v856
      %v923 = vsel %vm444, %v915, %v867
      %v925 = vsel %vm444, %v918, %v868
      %v927 = vsel %vm444, %v921, %v866
      %v929 = vsel %vm451, %v923, %v877
      %v931 = vsel %vm451, %v925, %v878
      %v933 = vsel %vm451, %v927, %v876
      %v936 = vsel %vm434, %v880, %v887
      %v939 = vsel %vm434, %v883, %v890
      %v942 = vsel %vm434, %v882, %v891
      %v944 = vsel %vm444, %v936, %v895
      %v946 = vsel %vm444, %v939, %v898
      %v948 = vsel %vm444, %v942, %v899
      %v950 = vsel %vm451, %v944, %v903
      %v952 = vsel %vm451, %v946, %v906
      %v954 = vsel %vm451, %v948, %v907
      %s955 = scalar_lea.vmem %s1, 4
      %v956 = vld [vmem:[%s955] sm:$0x3]
      %s957 = scalar_lea.vmem %s2, 8
      %v958 = vld [vmem:[%s957] sm:$0xf]
      %960 = vset.pattern.permute.xlu0 0
      %961 = vperm.xlu0 %960, %v958
      %v962 = vpop.permute.xlu0 %961
      %970 = vrot.lane.b32.xlu0 %v929, 17
      %v971 = vpop.permute.xlu0 %970
      %972 = vrot.lane.b32.xlu0 %v931, 17
      %v973 = vpop.permute.xlu0 %972
      %974 = vrot.lane.b32.xlu0 %v933, 17
      %v975 = vpop.permute.xlu0 %974
      %976 = vrot.lane.b32.xlu0 %v950, 17
      %v977 = vpop.permute.xlu0 %976
      %978 = vrot.lane.b32.xlu0 %v952, 17
      %v979 = vpop.permute.xlu0 %978
      %980 = vrot.lane.b32.xlu0 %v954, 17
      %v981 = vpop.permute.xlu0 %980
      %982 = vrot.lane.b32.xlu0 %v909, 17
      %v983 = vpop.permute.xlu0 %982
      %984 = vrot.lane.b32.xlu0 %v912, 17
      %v985 = vpop.permute.xlu0 %984
      %986 = vrot.lane.b32.xlu0 %v913, 17
      %v987 = vpop.permute.xlu0 %986
      %v988 = vsel %vm510, %v971, %v973
      %v989 = vsel %vm510, %v973, %v975
      %v990 = vsel %vm510, %v977, %v979
      %v991 = vsel %vm510, %v979, %v981
      %v992 = vsel %vm510, %v983, %v985
      %v993 = vsel %vm510, %v985, %v987
      %v999 = vsel %vm521, %v956, 0
      %v1002 = vsel %vm434, %v992, 0
      %v1005 = vsel %vm434, %v993, 0
      %1007 = vmatpush.bf16.msra.mxu0 0
      %1008 = vmatpush.bf16.msra.mxu0 0
      %1009 = vmatpush.bf16.msra.mxu0 0
      %1010 = vmatpush.bf16.msra.mxu0 0
      %1011 = vmatpush.bf16.msra.mxu0 0
      %1012 = vmatpush.bf16.msra.mxu0 %v1002
      %1013 = vmatpush.bf16.msra.mxu0 %v990
      %1014 = vmatpush.bf16.msra.mxu0 %v988
      %1015 = vmatmul.bf16.gmra.mxu0 %v999
      %v1016 = vpop.f32.mrf.mxu0
      %v1017 = vadd.f32 %v962, %v1016
      %v1018 = vpop.f32.mrf.mxu0
      %1019 = vdwg.mxu0
      %1020 = vmatpush.bf16.msra.mxu0 0
      %1021 = vmatpush.bf16.msra.mxu0 0
      %1022 = vmatpush.bf16.msra.mxu0 0
      %1023 = vmatpush.bf16.msra.mxu0 0
      %1024 = vmatpush.bf16.msra.mxu0 0
      %1025 = vmatpush.bf16.msra.mxu0 %v1005
      %1026 = vmatpush.bf16.msra.mxu0 %v991
      %1027 = vmatpush.bf16.msra.mxu0 %v989
      %1028 = vmatmul.bf16.gmra.mxu0 %v999
      %v1029 = vpop.f32.mrf.mxu0
      %v1030 = vadd.f32 %v962, %v1029
      %v1031 = vpop.f32.mrf.mxu0
      %1032 = vdwg.mxu0
      %vm1033 = vcmp.ge.f32.partialorder %v1017, 0.0
      %vm1034 = vcmp.ge.f32.partialorder %v1030, 0.0
      %v1035 = vmul.f32 %v1017, 0.25
      %v1036 = vmul.f32 %v1030, 0.25
      %v1037 = vsel %vm1033, %v1017, %v1035
      %v1038 = vsel %vm1034, %v1030, %v1036
      %v1039 = vpack.c.bf16 %v1038, %v1037
      %v1041 = vunpack.c.l.b16 %v1039
      %v1042 = vunpack.c.h.b16 %v1039
      %v1043 = vpack.c.b16 %v1041, %v1041
      %v1044 = vpack.c.b16 %v1042, %v1042
      %1047 = vst [vmem:[#allocation1] ss:$4 sm:$0xff] %v289
      %v1048 = vld.sshfl [vmem:[#allocation1 + $0x8] sm:$0xff pattern:$0x73625140]
      %v1050 = vld.sshfl [vmem:[#allocation1 + $0x10] sm:$0xff pattern:$0x73625140]
      %v1052 = vunpack.c.l.b16 %v1048
      %v1053 = vunpack.c.h.b16 %v1048
      %v1054 = vunpack.c.l.b16 0
      %v1055 = vunpack.c.h.b16 0
      %vm1056 = vcmp.ne.s32.totalorder %v1052, %v1054
      %vm1057 = vcmp.ne.s32.totalorder %v1053, %v1055
      %vm1058 = vmpackc.low %vm1057, %vm1056
      %v1059 = vunpack.c.l.b16 %v1050
      %v1060 = vunpack.c.h.b16 %v1050
      %v1061 = vunpack.c.l.b16 0
      %v1062 = vunpack.c.h.b16 0
      %vm1063 = vcmp.ne.s32.totalorder %v1059, %v1061
      %vm1064 = vcmp.ne.s32.totalorder %v1060, %v1062
      %vm1065 = vmpackc.low %vm1064, %vm1063
      %v1066 = vsel %vm1058, %v1043, 0
      %v1067 = vsel %vm1065, %v1044, 0
      %1068 = vst [vmem:[#allocation1] ss:$4 sm:$0xff] %v322
      %v1069 = vld.sshfl [vmem:[#allocation1 + $0x8] sm:$0xff pattern:$0x73625140]
      %v1071 = vld.sshfl [vmem:[#allocation1 + $0x10] sm:$0xff pattern:$0x73625140]
      %v1073 = vunpack.c.l.b16 %v1069
      %v1074 = vunpack.c.h.b16 %v1069
      %v1075 = vunpack.c.l.b16 0
      %v1076 = vunpack.c.h.b16 0
      %vm1077 = vcmp.ne.s32.totalorder %v1073, %v1075
      %vm1078 = vcmp.ne.s32.totalorder %v1074, %v1076
      %vm1079 = vmpackc.low %vm1078, %vm1077
      %v1080 = vunpack.c.l.b16 %v1071
      %v1081 = vunpack.c.h.b16 %v1071
      %v1082 = vunpack.c.l.b16 0
      %v1083 = vunpack.c.h.b16 0
      %vm1084 = vcmp.ne.s32.totalorder %v1080, %v1082
      %vm1085 = vcmp.ne.s32.totalorder %v1081, %v1083
      %vm1086 = vmpackc.low %vm1085, %vm1084
      %v1087 = vsel %vm1079, %v1043, 0
      %v1088 = vsel %vm1086, %v1044, 0
      %v1089 = vrot.slane %v1043, 6
      %v1090 = vrot.slane %v1044, 6
      %1091 = vrot.lane.b32.xlu0 %v1089, 127
      %v1092 = vpop.permute.xlu0 %1091
      %1093 = vrot.lane.b32.xlu0 %v1090, 127
      %v1094 = vpop.permute.xlu0 %1093
      %v1095 = vsel %vm355, %v350, %v1092
      %v1096 = vsel %vm355, %v1092, %v1094
      %v1099 = vrot.slane %v1087, 4
      %v1100 = vrot.slane %v1088, 4
      %1101 = vrot.lane.b32.xlu0 %v1099, 126
      %v1102 = vpop.permute.xlu0 %1101
      %1103 = vrot.lane.b32.xlu0 %v1100, 126
      %v1104 = vpop.permute.xlu0 %1103
      %v1105 = vsel %vm369, %v364, %v1102
      %v1106 = vsel %vm369, %v1102, %v1104
      %v1109 = vrot.slane %v1066, 2
      %v1110 = vrot.slane %v1067, 2
      %1111 = vrot.lane.b32.xlu0 %v1109, 112
      %v1112 = vpop.permute.xlu0 %1111
      %1113 = vrot.lane.b32.xlu0 %v1110, 112
      %v1114 = vpop.permute.xlu0 %1113
      %v1115 = vsel %vm383, %v378, %v1112
      %v1116 = vsel %vm383, %v1112, %v1114
      %1117 = vrot.lane.b32.xlu0 %v1043, 111
      %v1118 = vpop.permute.xlu0 %1117
      %1119 = vrot.lane.b32.xlu0 %v1044, 111
      %v1120 = vpop.permute.xlu0 %1119
      %v1121 = vsel %vm390, %v1118, %v1120
      %v1122 = vrot.slane %v1087, 6
      %v1123 = vrot.slane %v1088, 6
      %1124 = vrot.lane.b32.xlu0 %v1122, 110
      %v1125 = vpop.permute.xlu0 %1124
      %1126 = vrot.lane.b32.xlu0 %v1123, 110
      %v1127 = vpop.permute.xlu0 %1126
      %v1128 = vsel %vm400, %v1125, %v1127
      %v1129 = vsel %vm400, %v1127, %v399
      %v1130 = vrot.slane %v1066, 4
      %v1131 = vrot.slane %v1067, 4
      %1132 = vrot.lane.b32.xlu0 %v1130, 96
      %v1133 = vpop.permute.xlu0 %1132
      %1134 = vrot.lane.b32.xlu0 %v1131, 96
      %v1135 = vpop.permute.xlu0 %1134
      %v1136 = vsel %vm411, %v1133, %v1135
      %v1137 = vsel %vm411, %v1135, %v410
      %v1138 = vrot.slane %v1043, 2
      %v1139 = vrot.slane %v1044, 2
      %1140 = vrot.lane.b32.xlu0 %v1138, 95
      %v1141 = vpop.permute.xlu0 %1140
      %1142 = vrot.lane.b32.xlu0 %v1139, 95
      %v1143 = vpop.permute.xlu0 %1142
      %v1144 = vsel %vm422, %v1141, %v1143
      %v1145 = vsel %vm422, %v1143, %v421
      %1146 = vrot.lane.b32.xlu0 %v1087, 94
      %v1147 = vpop.permute.xlu0 %1146
      %1148 = vrot.lane.b32.xlu0 %v1088, 94
      %v1149 = vpop.permute.xlu0 %1148
      %v1150 = vsel %vm431, %v1147, %v1149
      %v1151 = vsel %vm431, %v1149, %v430
      %v1153 = vsel %vm434, 0, %v1095
      %v1156 = vsel %vm434, %v1066, %v1096
      %v1159 = vsel %vm434, %v1067, %v1094
      %v1161 = vsel %vm444, %v1153, %v1105
      %v1163 = vsel %vm444, %v1156, %v1106
      %v1165 = vsel %vm444, %v1159, %v1104
      %v1167 = vsel %vm451, %v1161, %v1115
      %v1169 = vsel %vm451, %v1163, %v1116
      %v1171 = vsel %vm451, %v1165, %v1114
      %v1174 = vsel %vm434, %v1118, %v1125
      %v1177 = vsel %vm434, %v1121, %v1128
      %v1180 = vsel %vm434, %v1120, %v1129
      %v1182 = vsel %vm444, %v1174, %v1133
      %v1184 = vsel %vm444, %v1177, %v1136
      %v1186 = vsel %vm444, %v1180, %v1137
      %v1188 = vsel %vm451, %v1182, %v1141
      %v1190 = vsel %vm451, %v1184, %v1144
      %v1192 = vsel %vm451, %v1186, %v1145
      %s1193 = scalar_lea.vmem %s1, 6
      %v1194 = vld [vmem:[%s1193] sm:$0x3]
      %s1195 = scalar_lea.vmem %s2, 12
      %v1196 = vld [vmem:[%s1195] sm:$0xf]
      %1198 = vset.pattern.permute.xlu0 0
      %1199 = vperm.xlu0 %1198, %v1196
      %v1200 = vpop.permute.xlu0 %1199
      %1208 = vrot.lane.b32.xlu0 %v1167, 17
      %v1209 = vpop.permute.xlu0 %1208
      %1210 = vrot.lane.b32.xlu0 %v1169, 17
      %v1211 = vpop.permute.xlu0 %1210
      %1212 = vrot.lane.b32.xlu0 %v1171, 17
      %v1213 = vpop.permute.xlu0 %1212
      %1214 = vrot.lane.b32.xlu0 %v1188, 17
      %v1215 = vpop.permute.xlu0 %1214
      %1216 = vrot.lane.b32.xlu0 %v1190, 17
      %v1217 = vpop.permute.xlu0 %1216
      %1218 = vrot.lane.b32.xlu0 %v1192, 17
      %v1219 = vpop.permute.xlu0 %1218
      %1220 = vrot.lane.b32.xlu0 %v1147, 17
      %v1221 = vpop.permute.xlu0 %1220
      %1222 = vrot.lane.b32.xlu0 %v1150, 17
      %v1223 = vpop.permute.xlu0 %1222
      %1224 = vrot.lane.b32.xlu0 %v1151, 17
      %v1225 = vpop.permute.xlu0 %1224
      %v1226 = vsel %vm510, %v1209, %v1211
      %v1227 = vsel %vm510, %v1211, %v1213
      %v1228 = vsel %vm510, %v1215, %v1217
      %v1229 = vsel %vm510, %v1217, %v1219
      %v1230 = vsel %vm510, %v1221, %v1223
      %v1231 = vsel %vm510, %v1223, %v1225
      %v1237 = vsel %vm521, %v1194, 0
      %v1240 = vsel %vm434, %v1230, 0
      %v1243 = vsel %vm434, %v1231, 0
      %1245 = vmatpush.bf16.msra.mxu0 0
      %1246 = vmatpush.bf16.msra.mxu0 0
      %1247 = vmatpush.bf16.msra.mxu0 0
      %1248 = vmatpush.bf16.msra.mxu0 0
      %1249 = vmatpush.bf16.msra.mxu0 0
      %1250 = vmatpush.bf16.msra.mxu0 %v1240
      %1251 = vmatpush.bf16.msra.mxu0 %v1228
      %1252 = vmatpush.bf16.msra.mxu0 %v1226
      %1253 = vmatmul.bf16.gmra.mxu0 %v1237
      %v1254 = vpop.f32.mrf.mxu0
      %v1255 = vadd.f32 %v1200, %v1254
      %v1256 = vpop.f32.mrf.mxu0
      %1257 = vdwg.mxu0
      %1258 = vmatpush.bf16.msra.mxu0 0
      %1259 = vmatpush.bf16.msra.mxu0 0
      %1260 = vmatpush.bf16.msra.mxu0 0
      %1261 = vmatpush.bf16.msra.mxu0 0
      %1262 = vmatpush.bf16.msra.mxu0 0
      %1263 = vmatpush.bf16.msra.mxu0 %v1243
      %1264 = vmatpush.bf16.msra.mxu0 %v1229
      %1265 = vmatpush.bf16.msra.mxu0 %v1227
      %1266 = vmatmul.bf16.gmra.mxu0 %v1237
      %v1267 = vpop.f32.mrf.mxu0
      %v1268 = vadd.f32 %v1200, %v1267
      %v1269 = vpop.f32.mrf.mxu0
      %1270 = vdwg.mxu0
      %vm1271 = vcmp.ge.f32.partialorder %v1255, 0.0
      %vm1272 = vcmp.ge.f32.partialorder %v1268, 0.0
      %v1273 = vmul.f32 %v1255, 0.25
      %v1274 = vmul.f32 %v1268, 0.25
      %v1275 = vsel %vm1271, %v1255, %v1273
      %v1276 = vsel %vm1272, %v1268, %v1274
      %v1277 = vpack.c.bf16 %v1275, %v1275
      %v1278 = vpack.c.bf16 %v1276, %v1276
      %v1279 = vld [vmem:[%s3] sm:$0xf]
      %v1280 = vld [vmem:[%s3 + $0x4] sm:$0xf]
      %v1281 = vld [vmem:[%s3 + $0x8] sm:$0x1]
      %v1282 = vld [vmem:[%s4] sm:$0xff]
      %v1283 = vld [vmem:[%s4 + $0x8] sm:$0xff]
      %v1284 = vld [vmem:[%s4 + $0x10] sm:$0x3]
      %1286 = vset.pattern.permute.xlu0 0
      %1287 = vperm.xlu0 %1286, %v1282
      %v1288 = vpop.permute.xlu0 %1287
      %1291 = vset.pattern.permute.xlu0 0
      %1292 = vperm.xlu0 %1291, %v1283
      %v1293 = vpop.permute.xlu0 %1292
      %1296 = vset.pattern.permute.xlu0 0
      %1297 = vperm.xlu0 %1296, %v1284
      %v1298 = vpop.permute.xlu0 %1297
      %v1303 = vunpack.c.l.b16 %v1279
      %v1304 = vunpack.c.l.b16 %v1280
      %v1305 = vunpack.c.l.b16 %v1281
      %v1306 = vpack.c.b16 %v1304, %v1303
      %v1307 = vpack.c.b16 %v1305, %v1305
      %vm1308 = vcmask 31744
      %v1310 = vsel %vm1308, %v1306, 0
      %v1313 = vsel %vm1308, %v1307, 0
      %v1316 = vsel %vm434, %v1277, 0
      %v1319 = vsel %vm434, %v1278, 0
      %1321 = vmatpush.bf16.msra.mxu0 0
      %1322 = vmatpush.bf16.msra.mxu0 0
      %1323 = vmatpush.bf16.msra.mxu0 0
      %1324 = vmatpush.bf16.msra.mxu0 0
      %1325 = vmatpush.bf16.msra.mxu0 0
      %1326 = vmatpush.bf16.msra.mxu0 0
      %1327 = vmatpush.bf16.msra.mxu0 0
      %1328 = vmatpush.bf16.msra.mxu0 %v1316
      %1329 = vmatmul.bf16.gmra.mxu0 %v1310
      %v1330 = vpop.f32.mrf.mxu0
      %v1331 = vadd.f32 %v1288, %v1330
      %v1332 = vpop.f32.mrf.mxu0
      %v1333 = vadd.f32 %v1293, %v1332
      %1334 = vmatmul.bf16.gmra.mxu0 %v1313
      %v1335 = vpop.f32.mrf.mxu0
      %v1336 = vadd.f32 %v1298, %v1335
      %v1337 = vpop.f32.mrf.mxu0
      %1338 = vdwg.mxu0
      %1339 = vmatpush.bf16.msra.mxu0 0
      %1340 = vmatpush.bf16.msra.mxu0 0
      %1341 = vmatpush.bf16.msra.mxu0 0
      %1342 = vmatpush.bf16.msra.mxu0 0
      %1343 = vmatpush.bf16.msra.mxu0 0
      %1344 = vmatpush.bf16.msra.mxu0 0
      %1345 = vmatpush.bf16.msra.mxu0 0
      %1346 = vmatpush.bf16.msra.mxu0 %v1319
      %1347 = vmatmul.bf16.gmra.mxu0 %v1310
      %v1348 = vpop.f32.mrf.mxu0
      %v1349 = vadd.f32 %v1288, %v1348
      %v1350 = vpop.f32.mrf.mxu0
      %v1351 = vadd.f32 %v1293, %v1350
      %1352 = vmatmul.bf16.gmra.mxu0 %v1313
      %v1353 = vpop.f32.mrf.mxu0
      %v1354 = vadd.f32 %v1298, %v1353
      %v1355 = vpop.f32.mrf.mxu0
      %1356 = vdwg.mxu0
      %1357 = vst [vmem:[%s251] sm:$0xff] %v1331
      %1358 = vst [vmem:[%s251 + $0x8] sm:$0xff] %v1349
      %1359 = vst [vmem:[%s251 + $0x10] sm:$0xff] %v1333
      %1360 = vst [vmem:[%s251 + $0x18] sm:$0xff] %v1351
      %1361 = vst [vmem:[%s251 + $0x20] sm:$0x3] %v1336
      %1362 = vst [vmem:[%s251 + $0x28] sm:$0x3] %v1354
      %p1363 = scmp.lt.s32.totalorder %s17, 1
      %s1364 = scalar_select %p1363, %s17, 1
      %s1365 = smul.addr %s1364, 6
      %s1366 = smul.addr %s1365, 8
      %s1367 = scalar_lea.vmem %s6, %s1366
      // Predicated region
      $region45: #{tpu_custom_call.1} parent=43 // pred_check
        %p1368 = pneg %p166
      $region46: #{tpu_custom_call.1} parent=43 // pred_check_branch
        %1370 = sbr.rel (%p1368) target = $region48
      $region47: #{tpu_custom_call.1} parent=43 // pred_region
        _
      $region48: #{tpu_custom_call.1} parent=43 // pred_fallthru
        _
    $region44: #{tpu_custom_call.1} parent=5 // pred_fallthru
      _
    %p1371 = scmp.le.s32.totalorder 2, %s12
    // Predicated region
    $region49: #{tpu_custom_call.1} parent=5 // pred_check
      %p1372 = pneg %p1371
    $region50: #{tpu_custom_call.1} parent=5 // pred_check_branch
      %1374 = sbr.rel (%p1372) target = $region52
    $region51: #{tpu_custom_call.1} parent=5 // pred_region
      %s1375 = ssub.s32 %s12, 2
      // Predicated region
      $region53: #{tpu_custom_call.1} parent=51 // pred_check
        %p1376 = pneg %p172
      $region54: #{tpu_custom_call.1} parent=51 // pred_check_branch
        %1378 = sbr.rel (%p1376) target = $region56
      $region55: #{tpu_custom_call.1} parent=51 // pred_region
        %p1379 = scmp.lt.s32.totalorder %s18, 1
        %s1380 = scalar_select %p1379, %s18, 1
        %s1381 = smul.addr %s1380, 6
        %s1382 = smul.addr %s1381, 8
        %s1383 = scalar_lea.vmem %s6, %s1382
      $region56: #{tpu_custom_call.1} parent=51 // pred_fallthru
        _
    $region52: #{tpu_custom_call.1} parent=5 // pred_fallthru
      _
  $region6: #{tpu_custom_call.1} parent=0 // loop_footer
    %s16 = sadd.s32 1, %s12
  $region7: #{tpu_custom_call.1} parent=0 // loop_footer_branch
    %11 = sbr.rel target = $region3
  $region8: #{tpu_custom_call.1} parent=0 // loop_exit
    _

</llo_original>
